<compile_context>
chip_gen: v5e
topology: v5e:2x2
jax: 0.10.0
libtpu: 0.0.40
codegen_flags: <defaults>
</compile_context>

<pallas_src>
import jax
import jax.numpy as jnp
import numpy as np
from jax.experimental import pallas as pl
from jax.experimental.pallas import tpu as pltpu


# --------------------------------------------------------------------------
# Pallas kernel: one (batch, spatial-tile) block of the LoT layer
# --------------------------------------------------------------------------
def lot_kernel(w_ref, colr_ref, coli_ref, aux_ref, out_ref):
    # w_ref    : (16, 27)     bf16  row 0 = conv_x, rows 1..15 = conv_y
    # colr_ref : (1, 27, tS)  bf16  im2col of cos(phi)  (tap k = kd*9+kh*3+kw)
    # coli_ref : (1, 27, tS)  bf16  im2col of sin(phi)
    # aux_ref  : (1, 3, tS)   f32   rows: cos(phi), sin(phi), mask*interior*scale
    # out_ref  : (1, 16, tS)  f32   row 0 -> b_i, rows 1..15 -> d_i
    w = w_ref[...]

    # Both convolutions for all 16 output channels: one matmul per field,
    # f32 accumulation on the MXU, lane-dense (Cout, S) orientation.
    a_r = jnp.dot(w, colr_ref[0], preferred_element_type=jnp.float32)  # (16, tS)
    a_i = jnp.dot(w, coli_ref[0], preferred_element_type=jnp.float32)  # (16, tS)

    aux = aux_ref[0]                 # (3, tS) f32
    cos_c = aux[0:1, :]              # unpadded cos(phi)
    sin_c = aux[1:2, :]              # unpadded sin(phi)
    m_eff = aux[2:3, :]              # mask * interior(LG zeroing) * 0.06/(B0*TE)

    out_ref[0] = (a_i * cos_c - a_r * sin_c) * m_eff


def _pick_spatial_tile(S):
    """Largest lane-friendly tile that divides S (falls back to whole S)."""
    if S % 128 != 0:
        return S
    for t in (8192, 4096, 2048, 1024, 512, 256, 128):
        if S % t == 0:
            return t
    return S


# --------------------------------------------------------------------------
# Wrapper: layout prep (im2col, effective mask), pallas_call, reshape back
# --------------------------------------------------------------------------
def lot_layer_forward(phi, mask, TE, B0, conv_x, conv_y):
    """LoTLayer.forward.  phi/mask: (B, 1, D, H, W). Returns (b_i, d_i)."""
    B, _, D, H, W = phi.shape
    S = D * H * W
    NCY = conv_y.shape[0]            # 15
    NOUT = 1 + NCY                   # 16

    phi3 = phi.reshape(B, D, H, W)
    cosr = jnp.cos(phi3)
    sini = jnp.sin(phi3)

    # Zero-pad the *image values* (matches F.conv3d(..., padding=1)).
    pad = ((0, 0), (1, 1), (1, 1), (1, 1))
    cpad = jnp.pad(cosr, pad)
    spad = jnp.pad(sini, pad)

    # Wrapper-side im2col: (B, D+2, H+2, W+2) -> (B, 27, S), tap k = kd*9+kh*3+kw
    def im2col(xp):
        cols = [xp[:, kd:kd + D, kh:kh + H, kw:kw + W].reshape(B, S)
                for kd in range(3) for kh in range(3) for kw in range(3)]
        return jnp.stack(cols, axis=1)

    cols_r = im2col(cpad).astype(jnp.bfloat16)
    cols_i = im2col(spad).astype(jnp.bfloat16)

    # Fold LG's boundary zeroing + brain mask + 3*0.02/(B0*TE) into one map.
    def edge(n):
        idx = jnp.arange(n)
        return ((idx > 0) & (idx < n - 1)).astype(jnp.float32)

    interior = (edge(D)[:, None, None]
                * edge(H)[None, :, None]
                * edge(W)[None, None, :])
    scale = (3.0 * 0.02) / (B0 * TE)
    mask_eff = (mask.reshape(B, D, H, W) * interior[None] * scale).reshape(B, S)

    aux = jnp.stack([cosr.reshape(B, S), sini.reshape(B, S), mask_eff],
                    axis=1).astype(jnp.float32)                     # (B, 3, S)

    # conv_x on top of conv_y -> one (16, 27) weight matrix, (O, kd, kh, kw).
    w_all = jnp.concatenate([conv_x.reshape(1, 27),
                             conv_y.reshape(NCY, 27)],
                            axis=0).astype(jnp.bfloat16)            # (16, 27)

    tS = _pick_spatial_tile(S)
    grid = (B, S // tS)

    out = pl.pallas_call(
        lot_kernel,
        out_shape=jax.ShapeDtypeStruct((B, NOUT, S), jnp.float32),
        grid=grid,
        in_specs=[
            pl.BlockSpec((NOUT, 27), lambda b, s: (0, 0)),      # weights (resident)
            pl.BlockSpec((1, 27, tS), lambda b, s: (b, 0, s)),  # cos im2col
            pl.BlockSpec((1, 27, tS), lambda b, s: (b, 0, s)),  # sin im2col
            pl.BlockSpec((1, 3, tS), lambda b, s: (b, 0, s)),   # cos/sin/mask_eff
        ],
        out_specs=pl.BlockSpec((1, NOUT, tS), lambda b, s: (b, 0, s)),
        compiler_params=pltpu.CompilerParams(
            dimension_semantics=("parallel", "parallel"),
            # Per-step buffers are a few hundred KiB; 32 MiB is safe on
            # v5e / v6e (128 MiB physical) and v7x (64 MiB physical).
            vmem_limit_bytes=32 * 1024 * 1024),
    )(w_all, cols_r, cols_i, aux)

    # (B, NOUT, S) is already NC(DHW)-ordered: reshape only, no transpose.
    b_i = out[:, 0:1, :].reshape(B, 1, D, H, W)
    d_i = out[:, 1:, :].reshape(B, NCY, D, H, W)
    return b_i, d_i


# --------------------------------------------------------------------------
# Pure-JAX reference (mirrors the PyTorch forward) for verification
# --------------------------------------------------------------------------
def _zero_boundaries(x):
    _, _, Dd, Hh, Ww = x.shape
    x = x.at[:, :, 0, :, :].set(0.0).at[:, :, Dd - 1, :, :].set(0.0)
    x = x.at[:, :, :, 0, :].set(0.0).at[:, :, :, Hh - 1, :].set(0.0)
    x = x.at[:, :, :, :, 0].set(0.0).at[:, :, :, :, Ww - 1].set(0.0)
    return x


def lot_layer_ref(phi, mask, TE, B0, conv_x, conv_y):
    prec = jax.lax.Precision.HIGHEST
    er, ei = jnp.cos(phi), jnp.sin(phi)

    def LG(img, w):
        out = jax.lax.conv_general_dilated(
            img, w, (1, 1, 1), ((1, 1), (1, 1), (1, 1)),
            dimension_numbers=('NCDHW', 'OIDHW', 'NCDHW'), precision=prec)
        return _zero_boundaries(out)

    def branch(w):
        a_r, a_i = LG(er, w), LG(ei, w)
        x = (a_i * er - a_r * ei) * mask
        x = x / (B0 * TE)
        return x * (3 * 0.02)

    return branch(conv_x), branch(conv_y)


# --------------------------------------------------------------------------
if __name__ == "__main__":
    B, D, H, W = 2, 16, 16, 16

    key = jax.random.PRNGKey(0)
    kphi, kmask, kw = jax.random.split(key, 3)
    phi = jax.random.uniform(kphi, (B, 1, D, H, W), jnp.float32, -3.0, 3.0)
    mask = (jax.random.uniform(kmask, (B, 1, D, H, W)) > 0.2).astype(jnp.float32)
    TE, B0 = 0.02, 3.0

    # Mirrors LoTLayer.__init__: conv_y = conv_x.repeat([15, 1, 1, 1, 1]).
    conv_x = jax.random.normal(kw, (1, 1, 3, 3, 3), jnp.float32) * 0.2
    conv_y = jnp.tile(conv_x, (15, 1, 1, 1, 1))

    fwd = jax.jit(lot_layer_forward)
    b_i, d_i = fwd(phi, mask, TE, B0, conv_x, conv_y)
    b_i = jax.block_until_ready(b_i)
    d_i = jax.block_until_ready(d_i)
    assert b_i.shape == (B, 1, D, H, W)
    assert d_i.shape == (B, 15, D, H, W)

    b_ref, d_ref = lot_layer_ref(phi, mask, TE, B0, conv_x, conv_y)
    b_ref = jax.block_until_ready(b_ref)
    d_ref = jax.block_until_ready(d_ref)

    # bf16 matmul operands (f32 accumulation) vs. a HIGHEST-precision f32
    # reference: 2e-2 tolerance accommodates the bf16 input rounding.
    np.testing.assert_allclose(np.asarray(b_i), np.asarray(b_ref),
                               rtol=2e-2, atol=2e-2)
    np.testing.assert_allclose(np.asarray(d_i), np.asarray(d_ref),
                               rtol=2e-2, atol=2e-2)
    print("KERNEL_OK")
</pallas_src>

<mosaic_0001>
module attributes {stable_mosaic.version = 11 : i64} {
  func.func @lot_kernel(%arg0: i32, %arg1: i32, %arg2: memref<16x27xbf16, #tpu.memory_space<vmem>>, %arg3: memref<1x27x4096xbf16, #tpu.memory_space<vmem>>, %arg4: memref<1x27x4096xbf16, #tpu.memory_space<vmem>>, %arg5: memref<1x3x4096xf32, #tpu.memory_space<vmem>>, %arg6: memref<1x16x4096xf32, #tpu.memory_space<vmem>>) attributes {dimension_semantics = [#tpu.dimension_semantics<parallel>, #tpu.dimension_semantics<parallel>], iteration_bounds = array<i64: 2, 1>, scalar_prefetch = 0 : i64, scratch_operands = 0 : i64, tpu.core_type = #tpu.core_type<tc>, window_params = [{pipeline_mode = #tpu.pipeline_mode<synchronous>, transform_indices = @transform_0, window_bounds = array<i64: 16, 27>}, {transform_indices = @transform_1, window_bounds = array<i64: 1, 27, 4096>}, {transform_indices = @transform_2, window_bounds = array<i64: 1, 27, 4096>}, {transform_indices = @transform_3, window_bounds = array<i64: 1, 3, 4096>}, {transform_indices = @transform_4, window_bounds = array<i64: 1, 16, 4096>}]} {
    %c0 = arith.constant 0 : index
    %c0_0 = arith.constant 0 : index
    %0 = vector.load %arg2[%c0, %c0_0] : memref<16x27xbf16, #tpu.memory_space<vmem>>, vector<16x27xbf16>
    %c0_1 = arith.constant 0 : index
    %c0_2 = arith.constant 0 : index
    %c0_3 = arith.constant 0 : index
    %1 = vector.load %arg3[%c0_1, %c0_2, %c0_3] : memref<1x27x4096xbf16, #tpu.memory_space<vmem>>, vector<1x27x4096xbf16>
    %2 = vector.shape_cast %1 : vector<1x27x4096xbf16> to vector<27x4096xbf16>
    %cst = arith.constant dense<0.000000e+00> : vector<16x4096xf32>
    %3 = tpu.matmul %0, %2, %cst {dimension_numbers = #tpu.dot_dimension_numbers<[1], [0], [0], [1], [0, 0, 1, 1], [], []>} : vector<16x27xbf16>, vector<27x4096xbf16>, vector<16x4096xf32> -> vector<16x4096xf32>
    %c0_4 = arith.constant 0 : index
    %c0_5 = arith.constant 0 : index
    %c0_6 = arith.constant 0 : index
    %4 = vector.load %arg4[%c0_4, %c0_5, %c0_6] : memref<1x27x4096xbf16, #tpu.memory_space<vmem>>, vector<1x27x4096xbf16>
    %5 = vector.shape_cast %4 : vector<1x27x4096xbf16> to vector<27x4096xbf16>
    %cst_7 = arith.constant dense<0.000000e+00> : vector<16x4096xf32>
    %6 = tpu.matmul %0, %5, %cst_7 {dimension_numbers = #tpu.dot_dimension_numbers<[1], [0], [0], [1], [0, 0, 1, 1], [], []>} : vector<16x27xbf16>, vector<27x4096xbf16>, vector<16x4096xf32> -> vector<16x4096xf32>
    %c0_8 = arith.constant 0 : index
    %c0_9 = arith.constant 0 : index
    %c0_10 = arith.constant 0 : index
    %7 = vector.load %arg5[%c0_8, %c0_9, %c0_10] : memref<1x3x4096xf32, #tpu.memory_space<vmem>>, vector<1x3x4096xf32>
    %8 = vector.shape_cast %7 : vector<1x3x4096xf32> to vector<3x4096xf32>
    %9 = vector.extract_strided_slice %8 {offsets = [0, 0], sizes = [1, 4096], strides = [1, 1]} : vector<3x4096xf32> to vector<1x4096xf32>
    %10 = vector.extract_strided_slice %8 {offsets = [1, 0], sizes = [1, 4096], strides = [1, 1]} : vector<3x4096xf32> to vector<1x4096xf32>
    %11 = vector.extract_strided_slice %8 {offsets = [2, 0], sizes = [1, 4096], strides = [1, 1]} : vector<3x4096xf32> to vector<1x4096xf32>
    %12 = vector.broadcast %9 : vector<1x4096xf32> to vector<16x4096xf32>
    %13 = arith.mulf %6, %12 : vector<16x4096xf32>
    %14 = vector.broadcast %10 : vector<1x4096xf32> to vector<16x4096xf32>
    %15 = arith.mulf %3, %14 : vector<16x4096xf32>
    %16 = arith.subf %13, %15 : vector<16x4096xf32>
    %17 = vector.broadcast %11 : vector<1x4096xf32> to vector<16x4096xf32>
    %18 = arith.mulf %16, %17 : vector<16x4096xf32>
    %c0_11 = arith.constant 0 : index
    %c0_12 = arith.constant 0 : index
    %c0_13 = arith.constant 0 : index
    %19 = vector.load %arg6[%c0_11, %c0_12, %c0_13] : memref<1x16x4096xf32, #tpu.memory_space<vmem>>, vector<1x16x4096xf32>
    %20 = vector.shape_cast %19 : vector<1x16x4096xf32> to vector<16x4096xf32>
    %21 = vector.shape_cast %18 : vector<16x4096xf32> to vector<1x16x4096xf32>
    tpu.vector_store %arg6[%c0_11, %c0_12, %c0_13], %21 {strides = array<i32>} : memref<1x16x4096xf32, #tpu.memory_space<vmem>>, vector<1x16x4096xf32>,
    return
  }
  func.func @transform_0(%arg0: i32, %arg1: i32) -> (i32, i32) {
    %c0_i32 = arith.constant 0 : i32
    %c0_i32_0 = arith.constant 0 : i32
    %c0_i32_1 = arith.constant 0 : i32
    return %c0_i32, %c0_i32_0 : i32, i32
  }
  func.func @transform_1(%arg0: i32, %arg1: i32) -> (i32, i32, i32) {
    %c0_i32 = arith.constant 0 : i32
    %c0_i32_0 = arith.constant 0 : i32
    return %arg0, %c0_i32, %arg1 : i32, i32, i32
  }
  func.func @transform_2(%arg0: i32, %arg1: i32) -> (i32, i32, i32) {
    %c0_i32 = arith.constant 0 : i32
    %c0_i32_0 = arith.constant 0 : i32
    return %arg0, %c0_i32, %arg1 : i32, i32, i32
  }
  func.func @transform_3(%arg0: i32, %arg1: i32) -> (i32, i32, i32) {
    %c0_i32 = arith.constant 0 : i32
    %c0_i32_0 = arith.constant 0 : i32
    return %arg0, %c0_i32, %arg1 : i32, i32, i32
  }
  func.func @transform_4(%arg0: i32, %arg1: i32) -> (i32, i32, i32) {
    %c0_i32 = arith.constant 0 : i32
    %c0_i32_0 = arith.constant 0 : i32
    return %arg0, %c0_i32, %arg1 : i32, i32, i32
  }
}

</mosaic_0001>

<llo_original>
// kernel: lot_layer_forward.1
$region0: #{lot_layer_forward.1}
  #allocation0 [shape = 'u32[]', space=smem, size = 0x4, offset = 0x4, fixed_abs, tag = 'smem constant byte address 0x4 - core index']
  #allocation1 [shape = 'u32[72,128]{1,0:T(1,128)}', space=vmem, size = 0x9000, scoped, tag = 'internal scratch']
  %s0 = inlined_call_operand.vmem [shape: bf16[16,27], index: 0, kind: input, shape index: {}]
  %s1 = inlined_call_operand.vmem [shape: bf16[2,27,4096], index: 1, kind: input, shape index: {}]
  %s2 = inlined_call_operand.vmem [shape: bf16[2,27,4096], index: 2, kind: input, shape index: {}]
  %s3 = inlined_call_operand.vmem [shape: f32[2,3,4096], index: 3, kind: input, shape index: {}]
  %s4 = inlined_call_operand.vmem [shape: f32[2,16,4096], index: 4, kind: output, shape index: {}]
  %s5 = sld [smem:[#allocation0]]
  $region49: #{lot_layer_forward.1} parent=0
    _
  %s7 = ssub.s32 1, %s5
  %s8 = scalar_select 0, %s7, %s5
  loop: start=0, step=1, limit=4
  $region2: #{lot_layer_forward.1} parent=0 // loop_pre_header
    _
  $region3: #{lot_layer_forward.1} parent=0 // loop_header
    %s10 = sphi 0, %s14
    %p11 = scmp.ge.s32.totalorder %s10, 4
    %s17 = sphi 0, %s29
    %s18 = sphi 0, %s25
    %s19 = sphi 0, %s17
    %s20 = sphi 0, %s18
    %s21 = sphi 0, %s19
    %s22 = sphi 0, %s20
    %s30 = sphi 0, %s30
    %s32 = sphi 0, %s30
    %s33 = sphi 0, %s32
    %s47 = sphi 0, %s33
    %s55 = sphi 0, %s57
    %s58 = sphi 0, %s55
    %s59 = sphi 0, %s58
    %s75 = sphi 0, %s59
    %s83 = sphi 0, %s85
    %s86 = sphi 0, %s83
    %s87 = sphi 0, %s86
    %s103 = sphi 0, %s87
    %s111 = sphi 0, %s113
    %s114 = sphi 0, %s111
    %s115 = sphi 0, %s114
    %s131 = sphi 0, %s115
    %s139 = sphi 0, %s141
    %s142 = sphi 0, %s139
    %s143 = sphi 0, %s142
    %s159 = sphi 0, %s143
  $region4: #{lot_layer_forward.1} parent=0 // loop_header_branch
    %13 = sbr.rel (%p11) target = $region8
  $region5: #{lot_layer_forward.1} parent=0 // loop_body
    %s15 = ssub.s32 %s10, 1
    %s16 = ssub.s32 %s10, 2
    %s23 = sadd.s32 1, %s18
    %p24 = scmp.ge.s32.totalorder %s23, 1
    %s25 = scalar_select %p24, 0, %s23
    %s26 = sadd.s32 1, %s17
    %s27 = scalar_select %p24, %s26, %s17
    %p28 = scmp.ge.s32.totalorder %s27, 2
    %s29 = scalar_select %p28, 0, %s27
    %s31 = sadd.s32 %s30, 1
    %p34 = scmp.eq.s32.totalorder %s10, 1
    %p35 = scmp.ne.s32.totalorder %s30, %s32
    %p36 = scmp.eq.s32.totalorder %s10, 0
    %p37 = por %p35, %p36
    %p38 = scmp.ne.s32.totalorder %s30, %s32
    %p39 = scmp.eq.s32.totalorder %s15, 1
    %p40 = por %p38, %p39
    %p41 = scmp.ne.s32.totalorder %s32, %s33
    %p42 = scmp.eq.s32.totalorder %s15, 0
    %p43 = por %p41, %p42
    %p44 = scmp.ne.s32.totalorder %s32, %s33
    %p45 = scmp.eq.s32.totalorder %s16, 1
    %p46 = por %p44, %p45
    %p48 = scmp.ne.s32.totalorder %s33, %s47
    %p49 = scmp.eq.s32.totalorder %s16, 0
    %p50 = por %p48, %p49
    %s51 = ssub.s32 %s17, %s29
    %s52 = ssub.s32 %s18, %s25
    %s53 = sor.u32 %s51, %s52
    %p54 = scmp.eq.s32.totalorder %s53, 0
    %s56 = sadd.s32 %s55, 1
    %s57 = scalar_select %p54, %s55, %s56
    %p60 = pneg %p54
    %p61 = scmp.eq.s32.totalorder %s10, 1
    %p62 = por %p60, %p61
    %p63 = scmp.ne.s32.totalorder %s55, %s58
    %p64 = scmp.eq.s32.totalorder %s10, 0
    %p65 = por %p63, %p64
    %p66 = scmp.ne.s32.totalorder %s55, %s58
    %p67 = scmp.eq.s32.totalorder %s15, 1
    %p68 = por %p66, %p67
    %p69 = scmp.ne.s32.totalorder %s58, %s59
    %p70 = scmp.eq.s32.totalorder %s15, 0
    %p71 = por %p69, %p70
    %p72 = scmp.ne.s32.totalorder %s58, %s59
    %p73 = scmp.eq.s32.totalorder %s16, 1
    %p74 = por %p72, %p73
    %p76 = scmp.ne.s32.totalorder %s59, %s75
    %p77 = scmp.eq.s32.totalorder %s16, 0
    %p78 = por %p76, %p77
    %s79 = ssub.s32 %s17, %s29
    %s80 = ssub.s32 %s18, %s25
    %s81 = sor.u32 %s79, %s80
    %p82 = scmp.eq.s32.totalorder %s81, 0
    %s84 = sadd.s32 %s83, 1
    %s85 = scalar_select %p82, %s83, %s84
    %p88 = pneg %p82
    %p89 = scmp.eq.s32.totalorder %s10, 1
    %p90 = por %p88, %p89
    %p91 = scmp.ne.s32.totalorder %s83, %s86
    %p92 = scmp.eq.s32.totalorder %s10, 0
    %p93 = por %p91, %p92
    %p94 = scmp.ne.s32.totalorder %s83, %s86
    %p95 = scmp.eq.s32.totalorder %s15, 1
    %p96 = por %p94, %p95
    %p97 = scmp.ne.s32.totalorder %s86, %s87
    %p98 = scmp.eq.s32.totalorder %s15, 0
    %p99 = por %p97, %p98
    %p100 = scmp.ne.s32.totalorder %s86, %s87
    %p101 = scmp.eq.s32.totalorder %s16, 1
    %p102 = por %p100, %p101
    %p104 = scmp.ne.s32.totalorder %s87, %s103
    %p105 = scmp.eq.s32.totalorder %s16, 0
    %p106 = por %p104, %p105
    %s107 = ssub.s32 %s17, %s29
    %s108 = ssub.s32 %s18, %s25
    %s109 = sor.u32 %s107, %s108
    %p110 = scmp.eq.s32.totalorder %s109, 0
    %s112 = sadd.s32 %s111, 1
    %s113 = scalar_select %p110, %s111, %s112
    %p116 = pneg %p110
    %p117 = scmp.eq.s32.totalorder %s10, 1
    %p118 = por %p116, %p117
    %p119 = scmp.ne.s32.totalorder %s111, %s114
    %p120 = scmp.eq.s32.totalorder %s10, 0
    %p121 = por %p119, %p120
    %p122 = scmp.ne.s32.totalorder %s111, %s114
    %p123 = scmp.eq.s32.totalorder %s15, 1
    %p124 = por %p122, %p123
    %p125 = scmp.ne.s32.totalorder %s114, %s115
    %p126 = scmp.eq.s32.totalorder %s15, 0
    %p127 = por %p125, %p126
    %p128 = scmp.ne.s32.totalorder %s114, %s115
    %p129 = scmp.eq.s32.totalorder %s16, 1
    %p130 = por %p128, %p129
    %p132 = scmp.ne.s32.totalorder %s115, %s131
    %p133 = scmp.eq.s32.totalorder %s16, 0
    %p134 = por %p132, %p133
    %s135 = ssub.s32 %s17, %s29
    %s136 = ssub.s32 %s18, %s25
    %s137 = sor.u32 %s135, %s136
    %p138 = scmp.eq.s32.totalorder %s137, 0
    %s140 = sadd.s32 %s139, 1
    %s141 = scalar_select %p138, %s139, %s140
    %p144 = pneg %p138
    %p145 = scmp.eq.s32.totalorder %s10, 1
    %p146 = por %p144, %p145
    %p147 = scmp.ne.s32.totalorder %s139, %s142
    %p148 = scmp.eq.s32.totalorder %s10, 0
    %p149 = por %p147, %p148
    %p150 = scmp.ne.s32.totalorder %s139, %s142
    %p151 = scmp.eq.s32.totalorder %s15, 1
    %p152 = por %p150, %p151
    %p153 = scmp.ne.s32.totalorder %s142, %s143
    %p154 = scmp.eq.s32.totalorder %s15, 0
    %p155 = por %p153, %p154
    %p156 = scmp.ne.s32.totalorder %s142, %s143
    %p157 = scmp.eq.s32.totalorder %s16, 1
    %p158 = por %p156, %p157
    %p160 = scmp.ne.s32.totalorder %s143, %s159
    %p161 = scmp.eq.s32.totalorder %s16, 0
    %p162 = por %p160, %p161
    %p163 = scmp.le.s32.totalorder 1, %s10
    %p164 = scmp.lt.s32.totalorder %s10, 3
    %p165 = pnand %p163, %p164
    %p166 = pneg %p165
    // Predicated region
    $region9: #{lot_layer_forward.1} parent=5 // pred_check
      _
    $region10: #{lot_layer_forward.1} parent=5 // pred_check_branch
      %168 = sbr.rel (%p165) target = $region12
    $region11: #{lot_layer_forward.1} parent=5 // pred_region
      %s169 = ssub.s32 %s10, 1
      // Predicated region
      $region13: #{lot_layer_forward.1} parent=11 // pred_check
        %p170 = pneg %p43
      $region14: #{lot_layer_forward.1} parent=11 // pred_check_branch
        %172 = sbr.rel (%p170) target = $region16
      $region15: #{lot_layer_forward.1} parent=11 // pred_region
        _
      $region16: #{lot_layer_forward.1} parent=11 // pred_fallthru
        _
    $region12: #{lot_layer_forward.1} parent=5 // pred_fallthru
      _
    %p173 = scmp.lt.s32.totalorder %s10, 2
    // Predicated region
    $region17: #{lot_layer_forward.1} parent=5 // pred_check
      %p174 = pneg %p173
    $region18: #{lot_layer_forward.1} parent=5 // pred_check_branch
      %176 = sbr.rel (%p174) target = $region20
    $region19: #{lot_layer_forward.1} parent=5 // pred_region
      // Predicated region
      $region21: #{lot_layer_forward.1} parent=19 // pred_check
        %p177 = pneg %p65
      $region22: #{lot_layer_forward.1} parent=19 // pred_check_branch
        %179 = sbr.rel (%p177) target = $region24
      $region23: #{lot_layer_forward.1} parent=19 // pred_region
        %s180 = smul.u32 32, %s18
        %p181 = scmp.lt.s32.totalorder %s17, 1
        %s182 = scalar_select %p181, %s17, 1
        %p183 = scmp.lt.s32.totalorder %s180, 31
        %s184 = scalar_select %p183, %s180, 31
        %s185 = smul.addr %s182, 128
        %s186 = sadd.s32 %s184, %s185
        %s187 = smul.addr %s186, 4
        %s188 = scalar_lea.vmem %s1, %s187
        %s189 = smul.u32 32, %s18
      $region24: #{lot_layer_forward.1} parent=19 // pred_fallthru
        _
      // Predicated region
      $region25: #{lot_layer_forward.1} parent=19 // pred_check
        %p190 = pneg %p93
      $region26: #{lot_layer_forward.1} parent=19 // pred_check_branch
        %192 = sbr.rel (%p190) target = $region28
      $region27: #{lot_layer_forward.1} parent=19 // pred_region
        %s193 = smul.u32 32, %s18
        %p194 = scmp.lt.s32.totalorder %s17, 1
        %s195 = scalar_select %p194, %s17, 1
        %p196 = scmp.lt.s32.totalorder %s193, 31
        %s197 = scalar_select %p196, %s193, 31
        %s198 = smul.addr %s195, 128
        %s199 = sadd.s32 %s197, %s198
        %s200 = smul.addr %s199, 4
        %s201 = scalar_lea.vmem %s2, %s200
        %s202 = smul.u32 32, %s18
      $region28: #{lot_layer_forward.1} parent=19 // pred_fallthru
        _
      // Predicated region
      $region29: #{lot_layer_forward.1} parent=19 // pred_check
        %p203 = pneg %p121
      $region30: #{lot_layer_forward.1} parent=19 // pred_check_branch
        %205 = sbr.rel (%p203) target = $region32
      $region31: #{lot_layer_forward.1} parent=19 // pred_region
        %s206 = smul.u32 32, %s18
        %p207 = scmp.lt.s32.totalorder %s17, 1
        %s208 = scalar_select %p207, %s17, 1
        %p209 = scmp.lt.s32.totalorder %s206, 31
        %s210 = scalar_select %p209, %s206, 31
        %s211 = smul.addr %s208, 32
        %s212 = sadd.s32 %s210, %s211
        %s213 = smul.addr %s212, 4
        %s214 = scalar_lea.vmem %s3, %s213
        %s215 = smul.u32 32, %s18
      $region32: #{lot_layer_forward.1} parent=19 // pred_fallthru
        _
    $region20: #{lot_layer_forward.1} parent=5 // pred_fallthru
      _
    %p216 = scmp.le.s32.totalorder 1, %s10
    %p217 = scmp.lt.s32.totalorder %s10, 3
    %p218 = pnand %p216, %p217
    %p219 = pneg %p218
    // Predicated region
    $region33: #{lot_layer_forward.1} parent=5 // pred_check
      _
    $region34: #{lot_layer_forward.1} parent=5 // pred_check_branch
      %221 = sbr.rel (%p218) target = $region36
    $region35: #{lot_layer_forward.1} parent=5 // pred_region
      %s222 = ssub.s32 %s10, 1
      %p223 = pneg %p43
      %p224 = pneg %p40
      %s225 = smul.u32 32, %s20
      %p226 = scmp.lt.s32.totalorder %s19, 1
      %s227 = scalar_select %p226, %s19, 1
      %p228 = scmp.lt.s32.totalorder %s225, 31
      %s229 = scalar_select %p228, %s225, 31
      %s230 = smul.addr %s227, 128
      %s231 = sadd.s32 %s229, %s230
      %s232 = smul.addr %s231, 4
      %s233 = scalar_lea.vmem %s1, %s232
      %p234 = pneg %p71
      %p235 = pneg %p68
      %s236 = smul.u32 32, %s20
      %p237 = scmp.lt.s32.totalorder %s19, 1
      %s238 = scalar_select %p237, %s19, 1
      %p239 = scmp.lt.s32.totalorder %s236, 31
      %s240 = scalar_select %p239, %s236, 31
      %s241 = smul.addr %s238, 128
      %s242 = sadd.s32 %s240, %s241
      %s243 = smul.addr %s242, 4
      %s244 = scalar_lea.vmem %s2, %s243
      %p245 = pneg %p99
      %p246 = pneg %p96
      %s247 = smul.u32 32, %s20
      %p248 = scmp.lt.s32.totalorder %s19, 1
      %s249 = scalar_select %p248, %s19, 1
      %p250 = scmp.lt.s32.totalorder %s247, 31
      %s251 = scalar_select %p250, %s247, 31
      %s252 = smul.addr %s249, 32
      %s253 = sadd.s32 %s251, %s252
      %s254 = smul.addr %s253, 4
      %s255 = scalar_lea.vmem %s3, %s254
      %p256 = pneg %p127
      %p257 = pneg %p124
      %p258 = pneg %p155
      %p259 = pneg %p152
      %s260 = smul.u32 32, %s20
      %p261 = scmp.lt.s32.totalorder %s19, 1
      %s262 = scalar_select %p261, %s19, 1
      %p263 = scmp.lt.s32.totalorder %s260, 31
      %s264 = scalar_select %p263, %s260, 31
      %s265 = smul.addr %s262, 64
      %s266 = sadd.s32 %s264, %s265
      %s267 = smul.addr %s266, 8
      %s268 = scalar_lea.vmem %s4, %s267
      %s269 = smul.u32 32, %s20
      %p270 = scmp.lt.s32.totalorder %s19, 1
      %s271 = scalar_select %p270, %s19, 1
      %p272 = scmp.lt.s32.totalorder %s269, 31
      %s273 = scalar_select %p272, %s269, 31
      %s274 = smul.addr %s271, 128
      %s275 = sadd.s32 %s273, %s274
      %s276 = smul.addr %s275, 4
      %s277 = scalar_lea.vmem %s1, %s276
      %s278 = smul.u32 32, %s20
      %s279 = smul.u32 32, %s20
      %p280 = scmp.lt.s32.totalorder %s19, 1
      %s281 = scalar_select %p280, %s19, 1
      %p282 = scmp.lt.s32.totalorder %s279, 31
      %s283 = scalar_select %p282, %s279, 31
      %s284 = smul.addr %s281, 128
      %s285 = sadd.s32 %s283, %s284
      %s286 = smul.addr %s285, 4
      %s287 = scalar_lea.vmem %s2, %s286
      %s288 = smul.u32 32, %s20
      %s289 = smul.u32 32, %s20
      %p290 = scmp.lt.s32.totalorder %s19, 1
      %s291 = scalar_select %p290, %s19, 1
      %p292 = scmp.lt.s32.totalorder %s289, 31
      %s293 = scalar_select %p292, %s289, 31
      %s294 = smul.addr %s291, 32
      %s295 = sadd.s32 %s293, %s294
      %s296 = smul.addr %s295, 4
      %s297 = scalar_lea.vmem %s3, %s296
      %s298 = smul.u32 32, %s20
      %s299 = smul.u32 32, %s20
      %p300 = scmp.lt.s32.totalorder %s19, 1
      %s301 = scalar_select %p300, %s19, 1
      %p302 = scmp.lt.s32.totalorder %s299, 31
      %s303 = scalar_select %p302, %s299, 31
      %s304 = smul.addr %s301, 64
      %s305 = sadd.s32 %s303, %s304
      %s306 = smul.addr %s305, 8
      %s307 = scalar_lea.vmem %s4, %s306
      %s308 = smul.u32 32, %s20
      %v310 = vld [vmem:[%s0] sm:$0xf]
      %v311 = vld [vmem:[%s0 + $0x4] sm:$0xf]
      %v312 = vld [vmem:[%s277] sm:$0xff]
      %v313 = vld [vmem:[%s277 + $0x8] sm:$0xff]
      %v314 = vld [vmem:[%s277 + $0x10] sm:$0xff]
      %v315 = vld [vmem:[%s277 + $0x18] sm:$0xff]
      %v316 = vld [vmem:[%s277 + $0x20] sm:$0xff]
      %v317 = vld [vmem:[%s277 + $0x28] sm:$0xff]
      %v318 = vld [vmem:[%s277 + $0x30] sm:$0xff]
      %v319 = vld [vmem:[%s277 + $0x38] sm:$0xff]
      %v320 = vld [vmem:[%s277 + $0x40] sm:$0xff]
      %v321 = vld [vmem:[%s277 + $0x48] sm:$0xff]
      %v322 = vld [vmem:[%s277 + $0x50] sm:$0xff]
      %v323 = vld [vmem:[%s277 + $0x58] sm:$0xff]
      %v324 = vld [vmem:[%s277 + $0x60] sm:$0xff]
      %v325 = vld [vmem:[%s277 + $0x68] sm:$0xff]
      %v326 = vld [vmem:[%s277 + $0x70] sm:$0xff]
      %v327 = vld [vmem:[%s277 + $0x78] sm:$0xff]
      %v328 = vld [vmem:[%s277 + $0x80] sm:$0xff]
      %v329 = vld [vmem:[%s277 + $0x88] sm:$0xff]
      %v330 = vld [vmem:[%s277 + $0x90] sm:$0xff]
      %v331 = vld [vmem:[%s277 + $0x98] sm:$0xff]
      %v332 = vld [vmem:[%s277 + $0xa0] sm:$0xff]
      %v333 = vld [vmem:[%s277 + $0xa8] sm:$0xff]
      %v334 = vld [vmem:[%s277 + $0xb0] sm:$0xff]
      %v335 = vld [vmem:[%s277 + $0xb8] sm:$0xff]
      %v336 = vld [vmem:[%s277 + $0xc0] sm:$0xff]
      %v337 = vld [vmem:[%s277 + $0xc8] sm:$0xff]
      %v338 = vld [vmem:[%s277 + $0xd0] sm:$0xff]
      %v339 = vld [vmem:[%s277 + $0xd8] sm:$0xff]
      %v340 = vld [vmem:[%s277 + $0xe0] sm:$0xff]
      %v341 = vld [vmem:[%s277 + $0xe8] sm:$0xff]
      %v342 = vld [vmem:[%s277 + $0xf0] sm:$0xff]
      %v343 = vld [vmem:[%s277 + $0xf8] sm:$0xff]
      %v344 = vld [vmem:[%s277 + $0x100] sm:$0xff]
      %v345 = vld [vmem:[%s277 + $0x108] sm:$0xff]
      %v346 = vld [vmem:[%s277 + $0x110] sm:$0xff]
      %v347 = vld [vmem:[%s277 + $0x118] sm:$0xff]
      %v348 = vld [vmem:[%s277 + $0x120] sm:$0xff]
      %v349 = vld [vmem:[%s277 + $0x128] sm:$0xff]
      %v350 = vld [vmem:[%s277 + $0x130] sm:$0xff]
      %v351 = vld [vmem:[%s277 + $0x138] sm:$0xff]
      %v352 = vld [vmem:[%s277 + $0x140] sm:$0xff]
      %v353 = vld [vmem:[%s277 + $0x148] sm:$0xff]
      %v354 = vld [vmem:[%s277 + $0x150] sm:$0xff]
      %v355 = vld [vmem:[%s277 + $0x158] sm:$0xff]
      %v356 = vld [vmem:[%s277 + $0x160] sm:$0xff]
      %v357 = vld [vmem:[%s277 + $0x168] sm:$0xff]
      %v358 = vld [vmem:[%s277 + $0x170] sm:$0xff]
      %v359 = vld [vmem:[%s277 + $0x178] sm:$0xff]
      %v360 = vld [vmem:[%s277 + $0x180] sm:$0x33]
      %v361 = vld [vmem:[%s277 + $0x188] sm:$0x33]
      %v362 = vld [vmem:[%s277 + $0x190] sm:$0x33]
      %v363 = vld [vmem:[%s277 + $0x198] sm:$0x33]
      %v364 = vld [vmem:[%s277 + $0x1a0] sm:$0x33]
      %v365 = vld [vmem:[%s277 + $0x1a8] sm:$0x33]
      %v366 = vld [vmem:[%s277 + $0x1b0] sm:$0x33]
      %v367 = vld [vmem:[%s277 + $0x1b8] sm:$0x33]
      %v368 = vld [vmem:[%s277 + $0x1c0] sm:$0x33]
      %v369 = vld [vmem:[%s277 + $0x1c8] sm:$0x33]
      %v370 = vld [vmem:[%s277 + $0x1d0] sm:$0x33]
      %v371 = vld [vmem:[%s277 + $0x1d8] sm:$0x33]
      %v372 = vld [vmem:[%s277 + $0x1e0] sm:$0x33]
      %v373 = vld [vmem:[%s277 + $0x1e8] sm:$0x33]
      %v374 = vld [vmem:[%s277 + $0x1f0] sm:$0x33]
      %v375 = vld [vmem:[%s277 + $0x1f8] sm:$0x33]
      %v378 = vunpack.c.l.b16 %v310
      %v379 = vunpack.c.l.b16 %v311
      %v380 = vpack.c.b16 %v379, %v378
      %v445 = vunpack.c.l.b16 %v312
      %v446 = vunpack.c.h.b16 %v312
      %v447 = vunpack.c.l.b16 %v313
      %v448 = vunpack.c.h.b16 %v313
      %v449 = vunpack.c.l.b16 %v314
      %v450 = vunpack.c.h.b16 %v314
      %v451 = vunpack.c.l.b16 %v315
      %v452 = vunpack.c.h.b16 %v315
      %v453 = vunpack.c.l.b16 %v316
      %v454 = vunpack.c.h.b16 %v316
      %v455 = vunpack.c.l.b16 %v317
      %v456 = vunpack.c.h.b16 %v317
      %v457 = vunpack.c.l.b16 %v318
      %v458 = vunpack.c.h.b16 %v318
      %v459 = vunpack.c.l.b16 %v319
      %v460 = vunpack.c.h.b16 %v319
      %v461 = vunpack.c.l.b16 %v320
      %v462 = vunpack.c.h.b16 %v320
      %v463 = vunpack.c.l.b16 %v321
      %v464 = vunpack.c.h.b16 %v321
      %v465 = vunpack.c.l.b16 %v322
      %v466 = vunpack.c.h.b16 %v322
      %v467 = vunpack.c.l.b16 %v323
      %v468 = vunpack.c.h.b16 %v323
      %v469 = vunpack.c.l.b16 %v324
      %v470 = vunpack.c.h.b16 %v324
      %v471 = vunpack.c.l.b16 %v325
      %v472 = vunpack.c.h.b16 %v325
      %v473 = vunpack.c.l.b16 %v326
      %v474 = vunpack.c.h.b16 %v326
      %v475 = vunpack.c.l.b16 %v327
      %v476 = vunpack.c.h.b16 %v327
      %v477 = vunpack.c.l.b16 %v328
      %v478 = vunpack.c.h.b16 %v328
      %v479 = vunpack.c.l.b16 %v329
      %v480 = vunpack.c.h.b16 %v329
      %v481 = vunpack.c.l.b16 %v330
      %v482 = vunpack.c.h.b16 %v330
      %v483 = vunpack.c.l.b16 %v331
      %v484 = vunpack.c.h.b16 %v331
      %v485 = vunpack.c.l.b16 %v332
      %v486 = vunpack.c.h.b16 %v332
      %v487 = vunpack.c.l.b16 %v333
      %v488 = vunpack.c.h.b16 %v333
      %v489 = vunpack.c.l.b16 %v334
      %v490 = vunpack.c.h.b16 %v334
      %v491 = vunpack.c.l.b16 %v335
      %v492 = vunpack.c.h.b16 %v335
      %v493 = vunpack.c.l.b16 %v336
      %v494 = vunpack.c.h.b16 %v336
      %v495 = vunpack.c.l.b16 %v337
      %v496 = vunpack.c.h.b16 %v337
      %v497 = vunpack.c.l.b16 %v338
      %v498 = vunpack.c.h.b16 %v338
      %v499 = vunpack.c.l.b16 %v339
      %v500 = vunpack.c.h.b16 %v339
      %v501 = vunpack.c.l.b16 %v340
      %v502 = vunpack.c.h.b16 %v340
      %v503 = vunpack.c.l.b16 %v341
      %v504 = vunpack.c.h.b16 %v341
      %v505 = vunpack.c.l.b16 %v342
      %v506 = vunpack.c.h.b16 %v342
      %v507 = vunpack.c.l.b16 %v343
      %v508 = vunpack.c.h.b16 %v343
      %v509 = vunpack.c.l.b16 %v344
      %v510 = vunpack.c.h.b16 %v344
      %v511 = vunpack.c.l.b16 %v345
      %v512 = vunpack.c.h.b16 %v345
      %v513 = vunpack.c.l.b16 %v346
      %v514 = vunpack.c.h.b16 %v346
      %v515 = vunpack.c.l.b16 %v347
      %v516 = vunpack.c.h.b16 %v347
      %v517 = vunpack.c.l.b16 %v348
      %v518 = vunpack.c.h.b16 %v348
      %v519 = vunpack.c.l.b16 %v349
      %v520 = vunpack.c.h.b16 %v349
      %v521 = vunpack.c.l.b16 %v350
      %v522 = vunpack.c.h.b16 %v350
      %v523 = vunpack.c.l.b16 %v351
      %v524 = vunpack.c.h.b16 %v351
      %v525 = vunpack.c.l.b16 %v352
      %v526 = vunpack.c.h.b16 %v352
      %v527 = vunpack.c.l.b16 %v353
      %v528 = vunpack.c.h.b16 %v353
      %v529 = vunpack.c.l.b16 %v354
      %v530 = vunpack.c.h.b16 %v354
      %v531 = vunpack.c.l.b16 %v355
      %v532 = vunpack.c.h.b16 %v355
      %v533 = vunpack.c.l.b16 %v356
      %v534 = vunpack.c.h.b16 %v356
      %v535 = vunpack.c.l.b16 %v357
      %v536 = vunpack.c.h.b16 %v357
      %v537 = vunpack.c.l.b16 %v358
      %v538 = vunpack.c.h.b16 %v358
      %v539 = vunpack.c.l.b16 %v359
      %v540 = vunpack.c.h.b16 %v359
      %v541 = vunpack.c.l.b16 %v360
      %v542 = vunpack.c.h.b16 %v360
      %v543 = vunpack.c.l.b16 %v361
      %v544 = vunpack.c.h.b16 %v361
      %v545 = vunpack.c.l.b16 %v362
      %v546 = vunpack.c.h.b16 %v362
      %v547 = vunpack.c.l.b16 %v363
      %v548 = vunpack.c.h.b16 %v363
      %v549 = vunpack.c.l.b16 %v364
      %v550 = vunpack.c.h.b16 %v364
      %v551 = vunpack.c.l.b16 %v365
      %v552 = vunpack.c.h.b16 %v365
      %v553 = vunpack.c.l.b16 %v366
      %v554 = vunpack.c.h.b16 %v366
      %v555 = vunpack.c.l.b16 %v367
      %v556 = vunpack.c.h.b16 %v367
      %v557 = vunpack.c.l.b16 %v368
      %v558 = vunpack.c.h.b16 %v368
      %v559 = vunpack.c.l.b16 %v369
      %v560 = vunpack.c.h.b16 %v369
      %v561 = vunpack.c.l.b16 %v370
      %v562 = vunpack.c.h.b16 %v370
      %v563 = vunpack.c.l.b16 %v371
      %v564 = vunpack.c.h.b16 %v371
      %v565 = vunpack.c.l.b16 %v372
      %v566 = vunpack.c.h.b16 %v372
      %v567 = vunpack.c.l.b16 %v373
      %v568 = vunpack.c.h.b16 %v373
      %v569 = vunpack.c.l.b16 %v374
      %v570 = vunpack.c.h.b16 %v374
      %v571 = vunpack.c.l.b16 %v375
      %v572 = vunpack.c.h.b16 %v375
      %v573 = vpack.c.b16 %v477, %v445
      %v574 = vpack.c.b16 %v478, %v446
      %v575 = vpack.c.b16 %v479, %v447
      %v576 = vpack.c.b16 %v480, %v448
      %v577 = vpack.c.b16 %v481, %v449
      %v578 = vpack.c.b16 %v482, %v450
      %v579 = vpack.c.b16 %v483, %v451
      %v580 = vpack.c.b16 %v484, %v452
      %v581 = vpack.c.b16 %v485, %v453
      %v582 = vpack.c.b16 %v486, %v454
      %v583 = vpack.c.b16 %v487, %v455
      %v584 = vpack.c.b16 %v488, %v456
      %v585 = vpack.c.b16 %v489, %v457
      %v586 = vpack.c.b16 %v490, %v458
      %v587 = vpack.c.b16 %v491, %v459
      %v588 = vpack.c.b16 %v492, %v460
      %v589 = vpack.c.b16 %v493, %v461
      %v590 = vpack.c.b16 %v494, %v462
      %v591 = vpack.c.b16 %v495, %v463
      %v592 = vpack.c.b16 %v496, %v464
      %v593 = vpack.c.b16 %v497, %v465
      %v594 = vpack.c.b16 %v498, %v466
      %v595 = vpack.c.b16 %v499, %v467
      %v596 = vpack.c.b16 %v500, %v468
      %v597 = vpack.c.b16 %v501, %v469
      %v598 = vpack.c.b16 %v502, %v470
      %v599 = vpack.c.b16 %v503, %v471
      %v600 = vpack.c.b16 %v504, %v472
      %v601 = vpack.c.b16 %v505, %v473
      %v602 = vpack.c.b16 %v506, %v474
      %v603 = vpack.c.b16 %v507, %v475
      %v604 = vpack.c.b16 %v508, %v476
      %v605 = vpack.c.b16 %v541, %v509
      %v606 = vpack.c.b16 %v542, %v510
      %v607 = vpack.c.b16 %v543, %v511
      %v608 = vpack.c.b16 %v544, %v512
      %v609 = vpack.c.b16 %v545, %v513
      %v610 = vpack.c.b16 %v546, %v514
      %v611 = vpack.c.b16 %v547, %v515
      %v612 = vpack.c.b16 %v548, %v516
      %v613 = vpack.c.b16 %v549, %v517
      %v614 = vpack.c.b16 %v550, %v518
      %v615 = vpack.c.b16 %v551, %v519
      %v616 = vpack.c.b16 %v552, %v520
      %v617 = vpack.c.b16 %v553, %v521
      %v618 = vpack.c.b16 %v554, %v522
      %v619 = vpack.c.b16 %v555, %v523
      %v620 = vpack.c.b16 %v556, %v524
      %v621 = vpack.c.b16 %v557, %v525
      %v622 = vpack.c.b16 %v558, %v526
      %v623 = vpack.c.b16 %v559, %v527
      %v624 = vpack.c.b16 %v560, %v528
      %v625 = vpack.c.b16 %v561, %v529
      %v626 = vpack.c.b16 %v562, %v530
      %v627 = vpack.c.b16 %v563, %v531
      %v628 = vpack.c.b16 %v564, %v532
      %v629 = vpack.c.b16 %v565, %v533
      %v630 = vpack.c.b16 %v566, %v534
      %v631 = vpack.c.b16 %v567, %v535
      %v632 = vpack.c.b16 %v568, %v536
      %v633 = vpack.c.b16 %v569, %v537
      %v634 = vpack.c.b16 %v570, %v538
      %v635 = vpack.c.b16 %v571, %v539
      %v636 = vpack.c.b16 %v572, %v540
      %vm669 = vcmask 220160
      %v671 = vsel %vm669, %v380, 0
      %vm673 = vcmask 1044480
      %vm674 = vcmask 1045504
      %v675 = vsel %vm673, 4294967295, 65535
      %v676 = vsel %vm674, %v675, 0
      %v678 = vand.u32 %v605, %v676
      %v681 = vand.u32 %v606, %v676
      %v684 = vand.u32 %v607, %v676
      %v687 = vand.u32 %v608, %v676
      %v690 = vand.u32 %v609, %v676
      %v693 = vand.u32 %v610, %v676
      %v696 = vand.u32 %v611, %v676
      %v699 = vand.u32 %v612, %v676
      %v702 = vand.u32 %v613, %v676
      %v705 = vand.u32 %v614, %v676
      %v708 = vand.u32 %v615, %v676
      %v711 = vand.u32 %v616, %v676
      %v714 = vand.u32 %v617, %v676
      %v717 = vand.u32 %v618, %v676
      %v720 = vand.u32 %v619, %v676
      %v723 = vand.u32 %v620, %v676
      %v726 = vand.u32 %v621, %v676
      %v729 = vand.u32 %v622, %v676
      %v732 = vand.u32 %v623, %v676
      %v735 = vand.u32 %v624, %v676
      %v738 = vand.u32 %v625, %v676
      %v741 = vand.u32 %v626, %v676
      %v744 = vand.u32 %v627, %v676
      %v747 = vand.u32 %v628, %v676
      %v750 = vand.u32 %v629, %v676
      %v753 = vand.u32 %v630, %v676
      %v756 = vand.u32 %v631, %v676
      %v759 = vand.u32 %v632, %v676
      %v762 = vand.u32 %v633, %v676
      %v765 = vand.u32 %v634, %v676
      %v768 = vand.u32 %v635, %v676
      %v771 = vand.u32 %v636, %v676
      %773 = vmatpush.bf16.msra.mxu0 0
      %774 = vmatpush.bf16.msra.mxu0 0
      %775 = vmatpush.bf16.msra.mxu0 0
      %776 = vmatpush.bf16.msra.mxu0 0
      %777 = vmatpush.bf16.msra.mxu0 0
      %778 = vmatpush.bf16.msra.mxu0 0
      %779 = vmatpush.bf16.msra.mxu0 %v678
      %780 = vmatpush.bf16.msra.mxu0 %v573
      %781 = vmatmul.bf16.gmra.mxu0 %v671
      %v782 = vpop.f32.mrf.mxu0
      %v783 = vadd.f32 0.0, %v782
      %v784 = vpop.f32.mrf.mxu0
      %v785 = vadd.f32 0.0, %v784
      %786 = vdwg.mxu0
      %787 = vmatpush.bf16.msra.mxu0 0
      %788 = vmatpush.bf16.msra.mxu0 0
      %789 = vmatpush.bf16.msra.mxu0 0
      %790 = vmatpush.bf16.msra.mxu0 0
      %791 = vmatpush.bf16.msra.mxu0 0
      %792 = vmatpush.bf16.msra.mxu0 0
      %793 = vmatpush.bf16.msra.mxu0 %v681
      %794 = vmatpush.bf16.msra.mxu0 %v574
      %795 = vmatmul.bf16.gmra.mxu0 %v671
      %v796 = vpop.f32.mrf.mxu0
      %v797 = vadd.f32 0.0, %v796
      %v798 = vpop.f32.mrf.mxu0
      %v799 = vadd.f32 0.0, %v798
      %800 = vdwg.mxu0
      %801 = vmatpush.bf16.msra.mxu0 0
      %802 = vmatpush.bf16.msra.mxu0 0
      %803 = vmatpush.bf16.msra.mxu0 0
      %804 = vmatpush.bf16.msra.mxu0 0
      %805 = vmatpush.bf16.msra.mxu0 0
      %806 = vmatpush.bf16.msra.mxu0 0
      %807 = vmatpush.bf16.msra.mxu0 %v684
      %808 = vmatpush.bf16.msra.mxu0 %v575
      %809 = vmatmul.bf16.gmra.mxu0 %v671
      %v810 = vpop.f32.mrf.mxu0
      %v811 = vadd.f32 0.0, %v810
      %v812 = vpop.f32.mrf.mxu0
      %v813 = vadd.f32 0.0, %v812
      %814 = vdwg.mxu0
      %815 = vmatpush.bf16.msra.mxu0 0
      %816 = vmatpush.bf16.msra.mxu0 0
      %817 = vmatpush.bf16.msra.mxu0 0
      %818 = vmatpush.bf16.msra.mxu0 0
      %819 = vmatpush.bf16.msra.mxu0 0
      %820 = vmatpush.bf16.msra.mxu0 0
      %821 = vmatpush.bf16.msra.mxu0 %v687
      %822 = vmatpush.bf16.msra.mxu0 %v576
      %823 = vmatmul.bf16.gmra.mxu0 %v671
      %v824 = vpop.f32.mrf.mxu0
      %v825 = vadd.f32 0.0, %v824
      %v826 = vpop.f32.mrf.mxu0
      %v827 = vadd.f32 0.0, %v826
      %828 = vdwg.mxu0
      %829 = vmatpush.bf16.msra.mxu0 0
      %830 = vmatpush.bf16.msra.mxu0 0
      %831 = vmatpush.bf16.msra.mxu0 0
      %832 = vmatpush.bf16.msra.mxu0 0
      %833 = vmatpush.bf16.msra.mxu0 0
      %834 = vmatpush.bf16.msra.mxu0 0
      %835 = vmatpush.bf16.msra.mxu0 %v690
      %836 = vmatpush.bf16.msra.mxu0 %v577
      %837 = vmatmul.bf16.gmra.mxu0 %v671
      %v838 = vpop.f32.mrf.mxu0
      %v839 = vadd.f32 0.0, %v838
      %v840 = vpop.f32.mrf.mxu0
      %v841 = vadd.f32 0.0, %v840
      %842 = vdwg.mxu0
      %843 = vmatpush.bf16.msra.mxu0 0
      %844 = vmatpush.bf16.msra.mxu0 0
      %845 = vmatpush.bf16.msra.mxu0 0
      %846 = vmatpush.bf16.msra.mxu0 0
      %847 = vmatpush.bf16.msra.mxu0 0
      %848 = vmatpush.bf16.msra.mxu0 0
      %849 = vmatpush.bf16.msra.mxu0 %v693
      %850 = vmatpush.bf16.msra.mxu0 %v578
      %851 = vmatmul.bf16.gmra.mxu0 %v671
      %v852 = vpop.f32.mrf.mxu0
      %v853 = vadd.f32 0.0, %v852
      %v854 = vpop.f32.mrf.mxu0
      %v855 = vadd.f32 0.0, %v854
      %856 = vdwg.mxu0
      %857 = vmatpush.bf16.msra.mxu0 0
      %858 = vmatpush.bf16.msra.mxu0 0
      %859 = vmatpush.bf16.msra.mxu0 0
      %860 = vmatpush.bf16.msra.mxu0 0
      %861 = vmatpush.bf16.msra.mxu0 0
      %862 = vmatpush.bf16.msra.mxu0 0
      %863 = vmatpush.bf16.msra.mxu0 %v696
      %864 = vmatpush.bf16.msra.mxu0 %v579
      %865 = vmatmul.bf16.gmra.mxu0 %v671
      %v866 = vpop.f32.mrf.mxu0
      %v867 = vadd.f32 0.0, %v866
      %v868 = vpop.f32.mrf.mxu0
      %v869 = vadd.f32 0.0, %v868
      %870 = vdwg.mxu0
      %871 = vmatpush.bf16.msra.mxu0 0
      %872 = vmatpush.bf16.msra.mxu0 0
      %873 = vmatpush.bf16.msra.mxu0 0
      %874 = vmatpush.bf16.msra.mxu0 0
      %875 = vmatpush.bf16.msra.mxu0 0
      %876 = vmatpush.bf16.msra.mxu0 0
      %877 = vmatpush.bf16.msra.mxu0 %v699
      %878 = vmatpush.bf16.msra.mxu0 %v580
      %879 = vmatmul.bf16.gmra.mxu0 %v671
      %v880 = vpop.f32.mrf.mxu0
      %v881 = vadd.f32 0.0, %v880
      %v882 = vpop.f32.mrf.mxu0
      %v883 = vadd.f32 0.0, %v882
      %884 = vdwg.mxu0
      %885 = vmatpush.bf16.msra.mxu0 0
      %886 = vmatpush.bf16.msra.mxu0 0
      %887 = vmatpush.bf16.msra.mxu0 0
      %888 = vmatpush.bf16.msra.mxu0 0
      %889 = vmatpush.bf16.msra.mxu0 0
      %890 = vmatpush.bf16.msra.mxu0 0
      %891 = vmatpush.bf16.msra.mxu0 %v702
      %892 = vmatpush.bf16.msra.mxu0 %v581
      %893 = vmatmul.bf16.gmra.mxu0 %v671
      %v894 = vpop.f32.mrf.mxu0
      %v895 = vadd.f32 0.0, %v894
      %v896 = vpop.f32.mrf.mxu0
      %v897 = vadd.f32 0.0, %v896
      %898 = vdwg.mxu0
      %899 = vmatpush.bf16.msra.mxu0 0
      %900 = vmatpush.bf16.msra.mxu0 0
      %901 = vmatpush.bf16.msra.mxu0 0
      %902 = vmatpush.bf16.msra.mxu0 0
      %903 = vmatpush.bf16.msra.mxu0 0
      %904 = vmatpush.bf16.msra.mxu0 0
      %905 = vmatpush.bf16.msra.mxu0 %v705
      %906 = vmatpush.bf16.msra.mxu0 %v582
      %907 = vmatmul.bf16.gmra.mxu0 %v671
      %v908 = vpop.f32.mrf.mxu0
      %v909 = vadd.f32 0.0, %v908
      %v910 = vpop.f32.mrf.mxu0
      %v911 = vadd.f32 0.0, %v910
      %912 = vdwg.mxu0
      %913 = vmatpush.bf16.msra.mxu0 0
      %914 = vmatpush.bf16.msra.mxu0 0
      %915 = vmatpush.bf16.msra.mxu0 0
      %916 = vmatpush.bf16.msra.mxu0 0
      %917 = vmatpush.bf16.msra.mxu0 0
      %918 = vmatpush.bf16.msra.mxu0 0
      %919 = vmatpush.bf16.msra.mxu0 %v708
      %920 = vmatpush.bf16.msra.mxu0 %v583
      %921 = vmatmul.bf16.gmra.mxu0 %v671
      %v922 = vpop.f32.mrf.mxu0
      %v923 = vadd.f32 0.0, %v922
      %v924 = vpop.f32.mrf.mxu0
      %v925 = vadd.f32 0.0, %v924
      %926 = vdwg.mxu0
      %927 = vmatpush.bf16.msra.mxu0 0
      %928 = vmatpush.bf16.msra.mxu0 0
      %929 = vmatpush.bf16.msra.mxu0 0
      %930 = vmatpush.bf16.msra.mxu0 0
      %931 = vmatpush.bf16.msra.mxu0 0
      %932 = vmatpush.bf16.msra.mxu0 0
      %933 = vmatpush.bf16.msra.mxu0 %v711
      %934 = vmatpush.bf16.msra.mxu0 %v584
      %935 = vmatmul.bf16.gmra.mxu0 %v671
      %v936 = vpop.f32.mrf.mxu0
      %v937 = vadd.f32 0.0, %v936
      %v938 = vpop.f32.mrf.mxu0
      %v939 = vadd.f32 0.0, %v938
      %940 = vdwg.mxu0
      %941 = vmatpush.bf16.msra.mxu0 0
      %942 = vmatpush.bf16.msra.mxu0 0
      %943 = vmatpush.bf16.msra.mxu0 0
      %944 = vmatpush.bf16.msra.mxu0 0
      %945 = vmatpush.bf16.msra.mxu0 0
      %946 = vmatpush.bf16.msra.mxu0 0
      %947 = vmatpush.bf16.msra.mxu0 %v714
      %948 = vmatpush.bf16.msra.mxu0 %v585
      %949 = vmatmul.bf16.gmra.mxu0 %v671
      %v950 = vpop.f32.mrf.mxu0
      %v951 = vadd.f32 0.0, %v950
      %v952 = vpop.f32.mrf.mxu0
      %v953 = vadd.f32 0.0, %v952
      %954 = vdwg.mxu0
      %955 = vmatpush.bf16.msra.mxu0 0
      %956 = vmatpush.bf16.msra.mxu0 0
      %957 = vmatpush.bf16.msra.mxu0 0
      %958 = vmatpush.bf16.msra.mxu0 0
      %959 = vmatpush.bf16.msra.mxu0 0
      %960 = vmatpush.bf16.msra.mxu0 0
      %961 = vmatpush.bf16.msra.mxu0 %v717
      %962 = vmatpush.bf16.msra.mxu0 %v586
      %963 = vmatmul.bf16.gmra.mxu0 %v671
      %v964 = vpop.f32.mrf.mxu0
      %v965 = vadd.f32 0.0, %v964
      %v966 = vpop.f32.mrf.mxu0
      %v967 = vadd.f32 0.0, %v966
      %968 = vdwg.mxu0
      %969 = vmatpush.bf16.msra.mxu0 0
      %970 = vmatpush.bf16.msra.mxu0 0
      %971 = vmatpush.bf16.msra.mxu0 0
      %972 = vmatpush.bf16.msra.mxu0 0
      %973 = vmatpush.bf16.msra.mxu0 0
      %974 = vmatpush.bf16.msra.mxu0 0
      %975 = vmatpush.bf16.msra.mxu0 %v720
      %976 = vmatpush.bf16.msra.mxu0 %v587
      %977 = vmatmul.bf16.gmra.mxu0 %v671
      %v978 = vpop.f32.mrf.mxu0
      %v979 = vadd.f32 0.0, %v978
      %v980 = vpop.f32.mrf.mxu0
      %v981 = vadd.f32 0.0, %v980
      %982 = vdwg.mxu0
      %983 = vmatpush.bf16.msra.mxu0 0
      %984 = vmatpush.bf16.msra.mxu0 0
      %985 = vmatpush.bf16.msra.mxu0 0
      %986 = vmatpush.bf16.msra.mxu0 0
      %987 = vmatpush.bf16.msra.mxu0 0
      %988 = vmatpush.bf16.msra.mxu0 0
      %989 = vmatpush.bf16.msra.mxu0 %v723
      %990 = vmatpush.bf16.msra.mxu0 %v588
      %991 = vmatmul.bf16.gmra.mxu0 %v671
      %v992 = vpop.f32.mrf.mxu0
      %v993 = vadd.f32 0.0, %v992
      %v994 = vpop.f32.mrf.mxu0
      %v995 = vadd.f32 0.0, %v994
      %996 = vdwg.mxu0
      %997 = vmatpush.bf16.msra.mxu0 0
      %998 = vmatpush.bf16.msra.mxu0 0
      %999 = vmatpush.bf16.msra.mxu0 0
      %1000 = vmatpush.bf16.msra.mxu0 0
      %1001 = vmatpush.bf16.msra.mxu0 0
      %1002 = vmatpush.bf16.msra.mxu0 0
      %1003 = vmatpush.bf16.msra.mxu0 %v726
      %1004 = vmatpush.bf16.msra.mxu0 %v589
      %1005 = vmatmul.bf16.gmra.mxu0 %v671
      %v1006 = vpop.f32.mrf.mxu0
      %v1007 = vadd.f32 0.0, %v1006
      %v1008 = vpop.f32.mrf.mxu0
      %v1009 = vadd.f32 0.0, %v1008
      %1010 = vdwg.mxu0
      %1011 = vmatpush.bf16.msra.mxu0 0
      %1012 = vmatpush.bf16.msra.mxu0 0
      %1013 = vmatpush.bf16.msra.mxu0 0
      %1014 = vmatpush.bf16.msra.mxu0 0
      %1015 = vmatpush.bf16.msra.mxu0 0
      %1016 = vmatpush.bf16.msra.mxu0 0
      %1017 = vmatpush.bf16.msra.mxu0 %v729
      %1018 = vmatpush.bf16.msra.mxu0 %v590
      %1019 = vmatmul.bf16.gmra.mxu0 %v671
      %v1020 = vpop.f32.mrf.mxu0
      %v1021 = vadd.f32 0.0, %v1020
      %v1022 = vpop.f32.mrf.mxu0
      %v1023 = vadd.f32 0.0, %v1022
      %1024 = vdwg.mxu0
      %1025 = vmatpush.bf16.msra.mxu0 0
      %1026 = vmatpush.bf16.msra.mxu0 0
      %1027 = vmatpush.bf16.msra.mxu0 0
      %1028 = vmatpush.bf16.msra.mxu0 0
      %1029 = vmatpush.bf16.msra.mxu0 0
      %1030 = vmatpush.bf16.msra.mxu0 0
      %1031 = vmatpush.bf16.msra.mxu0 %v732
      %1032 = vmatpush.bf16.msra.mxu0 %v591
      %1033 = vmatmul.bf16.gmra.mxu0 %v671
      %v1034 = vpop.f32.mrf.mxu0
      %v1035 = vadd.f32 0.0, %v1034
      %v1036 = vpop.f32.mrf.mxu0
      %v1037 = vadd.f32 0.0, %v1036
      %1038 = vdwg.mxu0
      %1039 = vmatpush.bf16.msra.mxu0 0
      %1040 = vmatpush.bf16.msra.mxu0 0
      %1041 = vmatpush.bf16.msra.mxu0 0
      %1042 = vmatpush.bf16.msra.mxu0 0
      %1043 = vmatpush.bf16.msra.mxu0 0
      %1044 = vmatpush.bf16.msra.mxu0 0
      %1045 = vmatpush.bf16.msra.mxu0 %v735
      %1046 = vmatpush.bf16.msra.mxu0 %v592
      %1047 = vmatmul.bf16.gmra.mxu0 %v671
      %v1048 = vpop.f32.mrf.mxu0
      %v1049 = vadd.f32 0.0, %v1048
      %v1050 = vpop.f32.mrf.mxu0
      %v1051 = vadd.f32 0.0, %v1050
      %1052 = vdwg.mxu0
      %1053 = vmatpush.bf16.msra.mxu0 0
      %1054 = vmatpush.bf16.msra.mxu0 0
      %1055 = vmatpush.bf16.msra.mxu0 0
      %1056 = vmatpush.bf16.msra.mxu0 0
      %1057 = vmatpush.bf16.msra.mxu0 0
      %1058 = vmatpush.bf16.msra.mxu0 0
      %1059 = vmatpush.bf16.msra.mxu0 %v738
      %1060 = vmatpush.bf16.msra.mxu0 %v593
      %1061 = vmatmul.bf16.gmra.mxu0 %v671
      %v1062 = vpop.f32.mrf.mxu0
      %v1063 = vadd.f32 0.0, %v1062
      %v1064 = vpop.f32.mrf.mxu0
      %v1065 = vadd.f32 0.0, %v1064
      %1066 = vdwg.mxu0
      %1067 = vmatpush.bf16.msra.mxu0 0
      %1068 = vmatpush.bf16.msra.mxu0 0
      %1069 = vmatpush.bf16.msra.mxu0 0
      %1070 = vmatpush.bf16.msra.mxu0 0
      %1071 = vmatpush.bf16.msra.mxu0 0
      %1072 = vmatpush.bf16.msra.mxu0 0
      %1073 = vmatpush.bf16.msra.mxu0 %v741
      %1074 = vmatpush.bf16.msra.mxu0 %v594
      %1075 = vmatmul.bf16.gmra.mxu0 %v671
      %v1076 = vpop.f32.mrf.mxu0
      %v1077 = vadd.f32 0.0, %v1076
      %v1078 = vpop.f32.mrf.mxu0
      %v1079 = vadd.f32 0.0, %v1078
      %1080 = vdwg.mxu0
      %1081 = vmatpush.bf16.msra.mxu0 0
      %1082 = vmatpush.bf16.msra.mxu0 0
      %1083 = vmatpush.bf16.msra.mxu0 0
      %1084 = vmatpush.bf16.msra.mxu0 0
      %1085 = vmatpush.bf16.msra.mxu0 0
      %1086 = vmatpush.bf16.msra.mxu0 0
      %1087 = vmatpush.bf16.msra.mxu0 %v744
      %1088 = vmatpush.bf16.msra.mxu0 %v595
      %1089 = vmatmul.bf16.gmra.mxu0 %v671
      %v1090 = vpop.f32.mrf.mxu0
      %v1091 = vadd.f32 0.0, %v1090
      %v1092 = vpop.f32.mrf.mxu0
      %v1093 = vadd.f32 0.0, %v1092
      %1094 = vdwg.mxu0
      %1095 = vmatpush.bf16.msra.mxu0 0
      %1096 = vmatpush.bf16.msra.mxu0 0
      %1097 = vmatpush.bf16.msra.mxu0 0
      %1098 = vmatpush.bf16.msra.mxu0 0
      %1099 = vmatpush.bf16.msra.mxu0 0
      %1100 = vmatpush.bf16.msra.mxu0 0
      %1101 = vmatpush.bf16.msra.mxu0 %v747
      %1102 = vmatpush.bf16.msra.mxu0 %v596
      %1103 = vmatmul.bf16.gmra.mxu0 %v671
      %v1104 = vpop.f32.mrf.mxu0
      %v1105 = vadd.f32 0.0, %v1104
      %v1106 = vpop.f32.mrf.mxu0
      %v1107 = vadd.f32 0.0, %v1106
      %1108 = vdwg.mxu0
      %1109 = vmatpush.bf16.msra.mxu0 0
      %1110 = vmatpush.bf16.msra.mxu0 0
      %1111 = vmatpush.bf16.msra.mxu0 0
      %1112 = vmatpush.bf16.msra.mxu0 0
      %1113 = vmatpush.bf16.msra.mxu0 0
      %1114 = vmatpush.bf16.msra.mxu0 0
      %1115 = vmatpush.bf16.msra.mxu0 %v750
      %1116 = vmatpush.bf16.msra.mxu0 %v597
      %1117 = vmatmul.bf16.gmra.mxu0 %v671
      %v1118 = vpop.f32.mrf.mxu0
      %v1119 = vadd.f32 0.0, %v1118
      %v1120 = vpop.f32.mrf.mxu0
      %v1121 = vadd.f32 0.0, %v1120
      %1122 = vdwg.mxu0
      %1123 = vmatpush.bf16.msra.mxu0 0
      %1124 = vmatpush.bf16.msra.mxu0 0
      %1125 = vmatpush.bf16.msra.mxu0 0
      %1126 = vmatpush.bf16.msra.mxu0 0
      %1127 = vmatpush.bf16.msra.mxu0 0
      %1128 = vmatpush.bf16.msra.mxu0 0
      %1129 = vmatpush.bf16.msra.mxu0 %v753
      %1130 = vmatpush.bf16.msra.mxu0 %v598
      %1131 = vmatmul.bf16.gmra.mxu0 %v671
      %v1132 = vpop.f32.mrf.mxu0
      %v1133 = vadd.f32 0.0, %v1132
      %v1134 = vpop.f32.mrf.mxu0
      %v1135 = vadd.f32 0.0, %v1134
      %1136 = vdwg.mxu0
      %1137 = vmatpush.bf16.msra.mxu0 0
      %1138 = vmatpush.bf16.msra.mxu0 0
      %1139 = vmatpush.bf16.msra.mxu0 0
      %1140 = vmatpush.bf16.msra.mxu0 0
      %1141 = vmatpush.bf16.msra.mxu0 0
      %1142 = vmatpush.bf16.msra.mxu0 0
      %1143 = vmatpush.bf16.msra.mxu0 %v756
      %1144 = vmatpush.bf16.msra.mxu0 %v599
      %1145 = vmatmul.bf16.gmra.mxu0 %v671
      %v1146 = vpop.f32.mrf.mxu0
      %v1147 = vadd.f32 0.0, %v1146
      %v1148 = vpop.f32.mrf.mxu0
      %v1149 = vadd.f32 0.0, %v1148
      %1150 = vdwg.mxu0
      %1151 = vmatpush.bf16.msra.mxu0 0
      %1152 = vmatpush.bf16.msra.mxu0 0
      %1153 = vmatpush.bf16.msra.mxu0 0
      %1154 = vmatpush.bf16.msra.mxu0 0
      %1155 = vmatpush.bf16.msra.mxu0 0
      %1156 = vmatpush.bf16.msra.mxu0 0
      %1157 = vmatpush.bf16.msra.mxu0 %v759
      %1158 = vmatpush.bf16.msra.mxu0 %v600
      %1159 = vmatmul.bf16.gmra.mxu0 %v671
      %v1160 = vpop.f32.mrf.mxu0
      %v1161 = vadd.f32 0.0, %v1160
      %v1162 = vpop.f32.mrf.mxu0
      %v1163 = vadd.f32 0.0, %v1162
      %1164 = vdwg.mxu0
      %1165 = vmatpush.bf16.msra.mxu0 0
      %1166 = vmatpush.bf16.msra.mxu0 0
      %1167 = vmatpush.bf16.msra.mxu0 0
      %1168 = vmatpush.bf16.msra.mxu0 0
      %1169 = vmatpush.bf16.msra.mxu0 0
      %1170 = vmatpush.bf16.msra.mxu0 0
      %1171 = vmatpush.bf16.msra.mxu0 %v762
      %1172 = vmatpush.bf16.msra.mxu0 %v601
      %1173 = vmatmul.bf16.gmra.mxu0 %v671
      %v1174 = vpop.f32.mrf.mxu0
      %v1175 = vadd.f32 0.0, %v1174
      %v1176 = vpop.f32.mrf.mxu0
      %v1177 = vadd.f32 0.0, %v1176
      %1178 = vdwg.mxu0
      %1179 = vmatpush.bf16.msra.mxu0 0
      %1180 = vmatpush.bf16.msra.mxu0 0
      %1181 = vmatpush.bf16.msra.mxu0 0
      %1182 = vmatpush.bf16.msra.mxu0 0
      %1183 = vmatpush.bf16.msra.mxu0 0
      %1184 = vmatpush.bf16.msra.mxu0 0
      %1185 = vmatpush.bf16.msra.mxu0 %v765
      %1186 = vmatpush.bf16.msra.mxu0 %v602
      %1187 = vmatmul.bf16.gmra.mxu0 %v671
      %v1188 = vpop.f32.mrf.mxu0
      %v1189 = vadd.f32 0.0, %v1188
      %v1190 = vpop.f32.mrf.mxu0
      %v1191 = vadd.f32 0.0, %v1190
      %1192 = vdwg.mxu0
      %1193 = vmatpush.bf16.msra.mxu0 0
      %1194 = vmatpush.bf16.msra.mxu0 0
      %1195 = vmatpush.bf16.msra.mxu0 0
      %1196 = vmatpush.bf16.msra.mxu0 0
      %1197 = vmatpush.bf16.msra.mxu0 0
      %1198 = vmatpush.bf16.msra.mxu0 0
      %1199 = vmatpush.bf16.msra.mxu0 %v768
      %1200 = vmatpush.bf16.msra.mxu0 %v603
      %1201 = vmatmul.bf16.gmra.mxu0 %v671
      %v1202 = vpop.f32.mrf.mxu0
      %v1203 = vadd.f32 0.0, %v1202
      %v1204 = vpop.f32.mrf.mxu0
      %v1205 = vadd.f32 0.0, %v1204
      %1206 = vdwg.mxu0
      %1207 = vmatpush.bf16.msra.mxu0 0
      %1208 = vmatpush.bf16.msra.mxu0 0
      %1209 = vmatpush.bf16.msra.mxu0 0
      %1210 = vmatpush.bf16.msra.mxu0 0
      %1211 = vmatpush.bf16.msra.mxu0 0
      %1212 = vmatpush.bf16.msra.mxu0 0
      %1213 = vmatpush.bf16.msra.mxu0 %v771
      %1214 = vmatpush.bf16.msra.mxu0 %v604
      %1215 = vmatmul.bf16.gmra.mxu0 %v671
      %v1216 = vpop.f32.mrf.mxu0
      %v1217 = vadd.f32 0.0, %v1216
      %v1218 = vpop.f32.mrf.mxu0
      %v1219 = vadd.f32 0.0, %v1218
      %1220 = vdwg.mxu0
      %v1221 = vld [vmem:[%s287] sm:$0xff]
      %v1222 = vld [vmem:[%s287 + $0x8] sm:$0xff]
      %v1223 = vld [vmem:[%s287 + $0x10] sm:$0xff]
      %v1224 = vld [vmem:[%s287 + $0x18] sm:$0xff]
      %v1225 = vld [vmem:[%s287 + $0x20] sm:$0xff]
      %v1226 = vld [vmem:[%s287 + $0x28] sm:$0xff]
      %v1227 = vld [vmem:[%s287 + $0x30] sm:$0xff]
      %v1228 = vld [vmem:[%s287 + $0x38] sm:$0xff]
      %v1229 = vld [vmem:[%s287 + $0x40] sm:$0xff]
      %v1230 = vld [vmem:[%s287 + $0x48] sm:$0xff]
      %v1231 = vld [vmem:[%s287 + $0x50] sm:$0xff]
      %v1232 = vld [vmem:[%s287 + $0x58] sm:$0xff]
      %v1233 = vld [vmem:[%s287 + $0x60] sm:$0xff]
      %v1234 = vld [vmem:[%s287 + $0x68] sm:$0xff]
      %v1235 = vld [vmem:[%s287 + $0x70] sm:$0xff]
      %v1236 = vld [vmem:[%s287 + $0x78] sm:$0xff]
      %v1237 = vld [vmem:[%s287 + $0x80] sm:$0xff]
      %v1238 = vld [vmem:[%s287 + $0x88] sm:$0xff]
      %v1239 = vld [vmem:[%s287 + $0x90] sm:$0xff]
      %v1240 = vld [vmem:[%s287 + $0x98] sm:$0xff]
      %v1241 = vld [vmem:[%s287 + $0xa0] sm:$0xff]
      %v1242 = vld [vmem:[%s287 + $0xa8] sm:$0xff]
      %v1243 = vld [vmem:[%s287 + $0xb0] sm:$0xff]
      %v1244 = vld [vmem:[%s287 + $0xb8] sm:$0xff]
      %v1245 = vld [vmem:[%s287 + $0xc0] sm:$0xff]
      %v1246 = vld [vmem:[%s287 + $0xc8] sm:$0xff]
      %v1247 = vld [vmem:[%s287 + $0xd0] sm:$0xff]
      %v1248 = vld [vmem:[%s287 + $0xd8] sm:$0xff]
      %v1249 = vld [vmem:[%s287 + $0xe0] sm:$0xff]
      %v1250 = vld [vmem:[%s287 + $0xe8] sm:$0xff]
      %v1251 = vld [vmem:[%s287 + $0xf0] sm:$0xff]
      %v1252 = vld [vmem:[%s287 + $0xf8] sm:$0xff]
      %v1253 = vld [vmem:[%s287 + $0x100] sm:$0xff]
      %v1254 = vld [vmem:[%s287 + $0x108] sm:$0xff]
      %v1255 = vld [vmem:[%s287 + $0x110] sm:$0xff]
      %v1256 = vld [vmem:[%s287 + $0x118] sm:$0xff]
      %v1257 = vld [vmem:[%s287 + $0x120] sm:$0xff]
      %v1258 = vld [vmem:[%s287 + $0x128] sm:$0xff]
      %v1259 = vld [vmem:[%s287 + $0x130] sm:$0xff]
      %v1260 = vld [vmem:[%s287 + $0x138] sm:$0xff]
      %v1261 = vld [vmem:[%s287 + $0x140] sm:$0xff]
      %v1262 = vld [vmem:[%s287 + $0x148] sm:$0xff]
      %v1263 = vld [vmem:[%s287 + $0x150] sm:$0xff]
      %v1264 = vld [vmem:[%s287 + $0x158] sm:$0xff]
      %v1265 = vld [vmem:[%s287 + $0x160] sm:$0xff]
      %v1266 = vld [vmem:[%s287 + $0x168] sm:$0xff]
      %v1267 = vld [vmem:[%s287 + $0x170] sm:$0xff]
      %v1268 = vld [vmem:[%s287 + $0x178] sm:$0xff]
      %v1269 = vld [vmem:[%s287 + $0x180] sm:$0x33]
      %v1270 = vld [vmem:[%s287 + $0x188] sm:$0x33]
      %v1271 = vld [vmem:[%s287 + $0x190] sm:$0x33]
      %v1272 = vld [vmem:[%s287 + $0x198] sm:$0x33]
      %v1273 = vld [vmem:[%s287 + $0x1a0] sm:$0x33]
      %v1274 = vld [vmem:[%s287 + $0x1a8] sm:$0x33]
      %v1275 = vld [vmem:[%s287 + $0x1b0] sm:$0x33]
      %v1276 = vld [vmem:[%s287 + $0x1b8] sm:$0x33]
      %v1277 = vld [vmem:[%s287 + $0x1c0] sm:$0x33]
      %v1278 = vld [vmem:[%s287 + $0x1c8] sm:$0x33]
      %v1279 = vld [vmem:[%s287 + $0x1d0] sm:$0x33]
      %v1280 = vld [vmem:[%s287 + $0x1d8] sm:$0x33]
      %v1281 = vld [vmem:[%s287 + $0x1e0] sm:$0x33]
      %v1282 = vld [vmem:[%s287 + $0x1e8] sm:$0x33]
      %v1283 = vld [vmem:[%s287 + $0x1f0] sm:$0x33]
      %v1284 = vld [vmem:[%s287 + $0x1f8] sm:$0x33]
      %v1349 = vunpack.c.l.b16 %v1221
      %v1350 = vunpack.c.h.b16 %v1221
      %v1351 = vunpack.c.l.b16 %v1222
      %v1352 = vunpack.c.h.b16 %v1222
      %v1353 = vunpack.c.l.b16 %v1223
      %v1354 = vunpack.c.h.b16 %v1223
      %v1355 = vunpack.c.l.b16 %v1224
      %v1356 = vunpack.c.h.b16 %v1224
      %v1357 = vunpack.c.l.b16 %v1225
      %v1358 = vunpack.c.h.b16 %v1225
      %v1359 = vunpack.c.l.b16 %v1226
      %v1360 = vunpack.c.h.b16 %v1226
      %v1361 = vunpack.c.l.b16 %v1227
      %v1362 = vunpack.c.h.b16 %v1227
      %v1363 = vunpack.c.l.b16 %v1228
      %v1364 = vunpack.c.h.b16 %v1228
      %v1365 = vunpack.c.l.b16 %v1229
      %v1366 = vunpack.c.h.b16 %v1229
      %v1367 = vunpack.c.l.b16 %v1230
      %v1368 = vunpack.c.h.b16 %v1230
      %v1369 = vunpack.c.l.b16 %v1231
      %v1370 = vunpack.c.h.b16 %v1231
      %v1371 = vunpack.c.l.b16 %v1232
      %v1372 = vunpack.c.h.b16 %v1232
      %v1373 = vunpack.c.l.b16 %v1233
      %v1374 = vunpack.c.h.b16 %v1233
      %v1375 = vunpack.c.l.b16 %v1234
      %v1376 = vunpack.c.h.b16 %v1234
      %v1377 = vunpack.c.l.b16 %v1235
      %v1378 = vunpack.c.h.b16 %v1235
      %v1379 = vunpack.c.l.b16 %v1236
      %v1380 = vunpack.c.h.b16 %v1236
      %v1381 = vunpack.c.l.b16 %v1237
      %v1382 = vunpack.c.h.b16 %v1237
      %v1383 = vunpack.c.l.b16 %v1238
      %v1384 = vunpack.c.h.b16 %v1238
      %v1385 = vunpack.c.l.b16 %v1239
      %v1386 = vunpack.c.h.b16 %v1239
      %v1387 = vunpack.c.l.b16 %v1240
      %v1388 = vunpack.c.h.b16 %v1240
      %v1389 = vunpack.c.l.b16 %v1241
      %v1390 = vunpack.c.h.b16 %v1241
      %v1391 = vunpack.c.l.b16 %v1242
      %v1392 = vunpack.c.h.b16 %v1242
      %v1393 = vunpack.c.l.b16 %v1243
      %v1394 = vunpack.c.h.b16 %v1243
      %v1395 = vunpack.c.l.b16 %v1244
      %v1396 = vunpack.c.h.b16 %v1244
      %v1397 = vunpack.c.l.b16 %v1245
      %v1398 = vunpack.c.h.b16 %v1245
      %v1399 = vunpack.c.l.b16 %v1246
      %v1400 = vunpack.c.h.b16 %v1246
      %v1401 = vunpack.c.l.b16 %v1247
      %v1402 = vunpack.c.h.b16 %v1247
      %v1403 = vunpack.c.l.b16 %v1248
      %v1404 = vunpack.c.h.b16 %v1248
      %v1405 = vunpack.c.l.b16 %v1249
      %v1406 = vunpack.c.h.b16 %v1249
      %v1407 = vunpack.c.l.b16 %v1250
      %v1408 = vunpack.c.h.b16 %v1250
      %v1409 = vunpack.c.l.b16 %v1251
      %v1410 = vunpack.c.h.b16 %v1251
      %v1411 = vunpack.c.l.b16 %v1252
      %v1412 = vunpack.c.h.b16 %v1252
      %v1413 = vunpack.c.l.b16 %v1253
      %v1414 = vunpack.c.h.b16 %v1253
      %v1415 = vunpack.c.l.b16 %v1254
      %v1416 = vunpack.c.h.b16 %v1254
      %v1417 = vunpack.c.l.b16 %v1255
      %v1418 = vunpack.c.h.b16 %v1255
      %v1419 = vunpack.c.l.b16 %v1256
      %v1420 = vunpack.c.h.b16 %v1256
      %v1421 = vunpack.c.l.b16 %v1257
      %v1422 = vunpack.c.h.b16 %v1257
      %v1423 = vunpack.c.l.b16 %v1258
      %v1424 = vunpack.c.h.b16 %v1258
      %v1425 = vunpack.c.l.b16 %v1259
      %v1426 = vunpack.c.h.b16 %v1259
      %v1427 = vunpack.c.l.b16 %v1260
      %v1428 = vunpack.c.h.b16 %v1260
      %v1429 = vunpack.c.l.b16 %v1261
      %v1430 = vunpack.c.h.b16 %v1261
      %v1431 = vunpack.c.l.b16 %v1262
      %v1432 = vunpack.c.h.b16 %v1262
      %v1433 = vunpack.c.l.b16 %v1263
      %v1434 = vunpack.c.h.b16 %v1263
      %v1435 = vunpack.c.l.b16 %v1264
      %v1436 = vunpack.c.h.b16 %v1264
      %v1437 = vunpack.c.l.b16 %v1265
      %v1438 = vunpack.c.h.b16 %v1265
      %v1439 = vunpack.c.l.b16 %v1266
      %v1440 = vunpack.c.h.b16 %v1266
      %v1441 = vunpack.c.l.b16 %v1267
      %v1442 = vunpack.c.h.b16 %v1267
      %v1443 = vunpack.c.l.b16 %v1268
      %v1444 = vunpack.c.h.b16 %v1268
      %v1445 = vunpack.c.l.b16 %v1269
      %v1446 = vunpack.c.h.b16 %v1269
      %v1447 = vunpack.c.l.b16 %v1270
      %v1448 = vunpack.c.h.b16 %v1270
      %v1449 = vunpack.c.l.b16 %v1271
      %v1450 = vunpack.c.h.b16 %v1271
      %v1451 = vunpack.c.l.b16 %v1272
      %v1452 = vunpack.c.h.b16 %v1272
      %v1453 = vunpack.c.l.b16 %v1273
      %v1454 = vunpack.c.h.b16 %v1273
      %v1455 = vunpack.c.l.b16 %v1274
      %v1456 = vunpack.c.h.b16 %v1274
      %v1457 = vunpack.c.l.b16 %v1275
      %v1458 = vunpack.c.h.b16 %v1275
      %v1459 = vunpack.c.l.b16 %v1276
      %v1460 = vunpack.c.h.b16 %v1276
      %v1461 = vunpack.c.l.b16 %v1277
      %v1462 = vunpack.c.h.b16 %v1277
      %v1463 = vunpack.c.l.b16 %v1278
      %v1464 = vunpack.c.h.b16 %v1278
      %v1465 = vunpack.c.l.b16 %v1279
      %v1466 = vunpack.c.h.b16 %v1279
      %v1467 = vunpack.c.l.b16 %v1280
      %v1468 = vunpack.c.h.b16 %v1280
      %v1469 = vunpack.c.l.b16 %v1281
      %v1470 = vunpack.c.h.b16 %v1281
      %v1471 = vunpack.c.l.b16 %v1282
      %v1472 = vunpack.c.h.b16 %v1282
      %v1473 = vunpack.c.l.b16 %v1283
      %v1474 = vunpack.c.h.b16 %v1283
      %v1475 = vunpack.c.l.b16 %v1284
      %v1476 = vunpack.c.h.b16 %v1284
      %v1477 = vpack.c.b16 %v1381, %v1349
      %v1478 = vpack.c.b16 %v1382, %v1350
      %v1479 = vpack.c.b16 %v1383, %v1351
      %v1480 = vpack.c.b16 %v1384, %v1352
      %v1481 = vpack.c.b16 %v1385, %v1353
      %v1482 = vpack.c.b16 %v1386, %v1354
      %v1483 = vpack.c.b16 %v1387, %v1355
      %v1484 = vpack.c.b16 %v1388, %v1356
      %v1485 = vpack.c.b16 %v1389, %v1357
      %v1486 = vpack.c.b16 %v1390, %v1358
      %v1487 = vpack.c.b16 %v1391, %v1359
      %v1488 = vpack.c.b16 %v1392, %v1360
      %v1489 = vpack.c.b16 %v1393, %v1361
      %v1490 = vpack.c.b16 %v1394, %v1362
      %v1491 = vpack.c.b16 %v1395, %v1363
      %v1492 = vpack.c.b16 %v1396, %v1364
      %v1493 = vpack.c.b16 %v1397, %v1365
      %v1494 = vpack.c.b16 %v1398, %v1366
      %v1495 = vpack.c.b16 %v1399, %v1367
      %v1496 = vpack.c.b16 %v1400, %v1368
      %v1497 = vpack.c.b16 %v1401, %v1369
      %v1498 = vpack.c.b16 %v1402, %v1370
      %v1499 = vpack.c.b16 %v1403, %v1371
      %v1500 = vpack.c.b16 %v1404, %v1372
      %v1501 = vpack.c.b16 %v1405, %v1373
      %v1502 = vpack.c.b16 %v1406, %v1374
      %v1503 = vpack.c.b16 %v1407, %v1375
      %v1504 = vpack.c.b16 %v1408, %v1376
      %v1505 = vpack.c.b16 %v1409, %v1377
      %v1506 = vpack.c.b16 %v1410, %v1378
      %v1507 = vpack.c.b16 %v1411, %v1379
      %v1508 = vpack.c.b16 %v1412, %v1380
      %v1509 = vpack.c.b16 %v1445, %v1413
      %v1510 = vpack.c.b16 %v1446, %v1414
      %v1511 = vpack.c.b16 %v1447, %v1415
      %v1512 = vpack.c.b16 %v1448, %v1416
      %v1513 = vpack.c.b16 %v1449, %v1417
      %v1514 = vpack.c.b16 %v1450, %v1418
      %v1515 = vpack.c.b16 %v1451, %v1419
      %v1516 = vpack.c.b16 %v1452, %v1420
      %v1517 = vpack.c.b16 %v1453, %v1421
      %v1518 = vpack.c.b16 %v1454, %v1422
      %v1519 = vpack.c.b16 %v1455, %v1423
      %v1520 = vpack.c.b16 %v1456, %v1424
      %v1521 = vpack.c.b16 %v1457, %v1425
      %v1522 = vpack.c.b16 %v1458, %v1426
      %v1523 = vpack.c.b16 %v1459, %v1427
      %v1524 = vpack.c.b16 %v1460, %v1428
      %v1525 = vpack.c.b16 %v1461, %v1429
      %v1526 = vpack.c.b16 %v1462, %v1430
      %v1527 = vpack.c.b16 %v1463, %v1431
      %v1528 = vpack.c.b16 %v1464, %v1432
      %v1529 = vpack.c.b16 %v1465, %v1433
      %v1530 = vpack.c.b16 %v1466, %v1434
      %v1531 = vpack.c.b16 %v1467, %v1435
      %v1532 = vpack.c.b16 %v1468, %v1436
      %v1533 = vpack.c.b16 %v1469, %v1437
      %v1534 = vpack.c.b16 %v1470, %v1438
      %v1535 = vpack.c.b16 %v1471, %v1439
      %v1536 = vpack.c.b16 %v1472, %v1440
      %v1537 = vpack.c.b16 %v1473, %v1441
      %v1538 = vpack.c.b16 %v1474, %v1442
      %v1539 = vpack.c.b16 %v1475, %v1443
      %v1540 = vpack.c.b16 %v1476, %v1444
      %v1574 = vand.u32 %v1509, %v676
      %v1577 = vand.u32 %v1510, %v676
      %v1580 = vand.u32 %v1511, %v676
      %v1583 = vand.u32 %v1512, %v676
      %v1586 = vand.u32 %v1513, %v676
      %v1589 = vand.u32 %v1514, %v676
      %v1592 = vand.u32 %v1515, %v676
      %v1595 = vand.u32 %v1516, %v676
      %v1598 = vand.u32 %v1517, %v676
      %v1601 = vand.u32 %v1518, %v676
      %v1604 = vand.u32 %v1519, %v676
      %v1607 = vand.u32 %v1520, %v676
      %v1610 = vand.u32 %v1521, %v676
      %v1613 = vand.u32 %v1522, %v676
      %v1616 = vand.u32 %v1523, %v676
      %v1619 = vand.u32 %v1524, %v676
      %v1622 = vand.u32 %v1525, %v676
      %v1625 = vand.u32 %v1526, %v676
      %v1628 = vand.u32 %v1527, %v676
      %v1631 = vand.u32 %v1528, %v676
      %v1634 = vand.u32 %v1529, %v676
      %v1637 = vand.u32 %v1530, %v676
      %v1640 = vand.u32 %v1531, %v676
      %v1643 = vand.u32 %v1532, %v676
      %v1646 = vand.u32 %v1533, %v676
      %v1649 = vand.u32 %v1534, %v676
      %v1652 = vand.u32 %v1535, %v676
      %v1655 = vand.u32 %v1536, %v676
      %v1658 = vand.u32 %v1537, %v676
      %v1661 = vand.u32 %v1538, %v676
      %v1664 = vand.u32 %v1539, %v676
      %v1667 = vand.u32 %v1540, %v676
      %1669 = vmatpush.bf16.msra.mxu0 0
      %1670 = vmatpush.bf16.msra.mxu0 0
      %1671 = vmatpush.bf16.msra.mxu0 0
      %1672 = vmatpush.bf16.msra.mxu0 0
      %1673 = vmatpush.bf16.msra.mxu0 0
      %1674 = vmatpush.bf16.msra.mxu0 0
      %1675 = vmatpush.bf16.msra.mxu0 %v1574
      %1676 = vmatpush.bf16.msra.mxu0 %v1477
      %1677 = vmatmul.bf16.gmra.mxu0 %v671
      %v1678 = vpop.f32.mrf.mxu0
      %v1679 = vadd.f32 0.0, %v1678
      %v1680 = vpop.f32.mrf.mxu0
      %v1681 = vadd.f32 0.0, %v1680
      %1682 = vdwg.mxu0
      %1683 = vmatpush.bf16.msra.mxu0 0
      %1684 = vmatpush.bf16.msra.mxu0 0
      %1685 = vmatpush.bf16.msra.mxu0 0
      %1686 = vmatpush.bf16.msra.mxu0 0
      %1687 = vmatpush.bf16.msra.mxu0 0
      %1688 = vmatpush.bf16.msra.mxu0 0
      %1689 = vmatpush.bf16.msra.mxu0 %v1577
      %1690 = vmatpush.bf16.msra.mxu0 %v1478
      %1691 = vmatmul.bf16.gmra.mxu0 %v671
      %v1692 = vpop.f32.mrf.mxu0
      %v1693 = vadd.f32 0.0, %v1692
      %v1694 = vpop.f32.mrf.mxu0
      %v1695 = vadd.f32 0.0, %v1694
      %1696 = vdwg.mxu0
      %1697 = vmatpush.bf16.msra.mxu0 0
      %1698 = vmatpush.bf16.msra.mxu0 0
      %1699 = vmatpush.bf16.msra.mxu0 0
      %1700 = vmatpush.bf16.msra.mxu0 0
      %1701 = vmatpush.bf16.msra.mxu0 0
      %1702 = vmatpush.bf16.msra.mxu0 0
      %1703 = vmatpush.bf16.msra.mxu0 %v1580
      %1704 = vmatpush.bf16.msra.mxu0 %v1479
      %1705 = vmatmul.bf16.gmra.mxu0 %v671
      %v1706 = vpop.f32.mrf.mxu0
      %v1707 = vadd.f32 0.0, %v1706
      %v1708 = vpop.f32.mrf.mxu0
      %v1709 = vadd.f32 0.0, %v1708
      %1710 = vdwg.mxu0
      %1711 = vmatpush.bf16.msra.mxu0 0
      %1712 = vmatpush.bf16.msra.mxu0 0
      %1713 = vmatpush.bf16.msra.mxu0 0
      %1714 = vmatpush.bf16.msra.mxu0 0
      %1715 = vmatpush.bf16.msra.mxu0 0
      %1716 = vmatpush.bf16.msra.mxu0 0
      %1717 = vmatpush.bf16.msra.mxu0 %v1583
      %1718 = vmatpush.bf16.msra.mxu0 %v1480
      %1719 = vmatmul.bf16.gmra.mxu0 %v671
      %v1720 = vpop.f32.mrf.mxu0
      %v1721 = vadd.f32 0.0, %v1720
      %v1722 = vpop.f32.mrf.mxu0
      %v1723 = vadd.f32 0.0, %v1722
      %1724 = vdwg.mxu0
      %1725 = vmatpush.bf16.msra.mxu0 0
      %1726 = vmatpush.bf16.msra.mxu0 0
      %1727 = vmatpush.bf16.msra.mxu0 0
      %1728 = vmatpush.bf16.msra.mxu0 0
      %1729 = vmatpush.bf16.msra.mxu0 0
      %1730 = vmatpush.bf16.msra.mxu0 0
      %1731 = vmatpush.bf16.msra.mxu0 %v1586
      %1732 = vmatpush.bf16.msra.mxu0 %v1481
      %1733 = vmatmul.bf16.gmra.mxu0 %v671
      %v1734 = vpop.f32.mrf.mxu0
      %v1735 = vadd.f32 0.0, %v1734
      %v1736 = vpop.f32.mrf.mxu0
      %v1737 = vadd.f32 0.0, %v1736
      %1738 = vdwg.mxu0
      %1739 = vmatpush.bf16.msra.mxu0 0
      %1740 = vmatpush.bf16.msra.mxu0 0
      %1741 = vmatpush.bf16.msra.mxu0 0
      %1742 = vmatpush.bf16.msra.mxu0 0
      %1743 = vmatpush.bf16.msra.mxu0 0
      %1744 = vmatpush.bf16.msra.mxu0 0
      %1745 = vmatpush.bf16.msra.mxu0 %v1589
      %1746 = vmatpush.bf16.msra.mxu0 %v1482
      %1747 = vmatmul.bf16.gmra.mxu0 %v671
      %v1748 = vpop.f32.mrf.mxu0
      %v1749 = vadd.f32 0.0, %v1748
      %v1750 = vpop.f32.mrf.mxu0
      %v1751 = vadd.f32 0.0, %v1750
      %1752 = vdwg.mxu0
      %1753 = vmatpush.bf16.msra.mxu0 0
      %1754 = vmatpush.bf16.msra.mxu0 0
      %1755 = vmatpush.bf16.msra.mxu0 0
      %1756 = vmatpush.bf16.msra.mxu0 0
      %1757 = vmatpush.bf16.msra.mxu0 0
      %1758 = vmatpush.bf16.msra.mxu0 0
      %1759 = vmatpush.bf16.msra.mxu0 %v1592
      %1760 = vmatpush.bf16.msra.mxu0 %v1483
      %1761 = vmatmul.bf16.gmra.mxu0 %v671
      %v1762 = vpop.f32.mrf.mxu0
      %v1763 = vadd.f32 0.0, %v1762
      %v1764 = vpop.f32.mrf.mxu0
      %v1765 = vadd.f32 0.0, %v1764
      %1766 = vdwg.mxu0
      %1767 = vmatpush.bf16.msra.mxu0 0
      %1768 = vmatpush.bf16.msra.mxu0 0
      %1769 = vmatpush.bf16.msra.mxu0 0
      %1770 = vmatpush.bf16.msra.mxu0 0
      %1771 = vmatpush.bf16.msra.mxu0 0
      %1772 = vmatpush.bf16.msra.mxu0 0
      %1773 = vmatpush.bf16.msra.mxu0 %v1595
      %1774 = vmatpush.bf16.msra.mxu0 %v1484
      %1775 = vmatmul.bf16.gmra.mxu0 %v671
      %v1776 = vpop.f32.mrf.mxu0
      %v1777 = vadd.f32 0.0, %v1776
      %v1778 = vpop.f32.mrf.mxu0
      %v1779 = vadd.f32 0.0, %v1778
      %1780 = vdwg.mxu0
      %1781 = vmatpush.bf16.msra.mxu0 0
      %1782 = vmatpush.bf16.msra.mxu0 0
      %1783 = vmatpush.bf16.msra.mxu0 0
      %1784 = vmatpush.bf16.msra.mxu0 0
      %1785 = vmatpush.bf16.msra.mxu0 0
      %1786 = vmatpush.bf16.msra.mxu0 0
      %1787 = vmatpush.bf16.msra.mxu0 %v1598
      %1788 = vmatpush.bf16.msra.mxu0 %v1485
      %1789 = vmatmul.bf16.gmra.mxu0 %v671
      %v1790 = vpop.f32.mrf.mxu0
      %v1791 = vadd.f32 0.0, %v1790
      %v1792 = vpop.f32.mrf.mxu0
      %v1793 = vadd.f32 0.0, %v1792
      %1794 = vdwg.mxu0
      %1795 = vmatpush.bf16.msra.mxu0 0
      %1796 = vmatpush.bf16.msra.mxu0 0
      %1797 = vmatpush.bf16.msra.mxu0 0
      %1798 = vmatpush.bf16.msra.mxu0 0
      %1799 = vmatpush.bf16.msra.mxu0 0
      %1800 = vmatpush.bf16.msra.mxu0 0
      %1801 = vmatpush.bf16.msra.mxu0 %v1601
      %1802 = vmatpush.bf16.msra.mxu0 %v1486
      %1803 = vmatmul.bf16.gmra.mxu0 %v671
      %v1804 = vpop.f32.mrf.mxu0
      %v1805 = vadd.f32 0.0, %v1804
      %v1806 = vpop.f32.mrf.mxu0
      %v1807 = vadd.f32 0.0, %v1806
      %1808 = vdwg.mxu0
      %1809 = vmatpush.bf16.msra.mxu0 0
      %1810 = vmatpush.bf16.msra.mxu0 0
      %1811 = vmatpush.bf16.msra.mxu0 0
      %1812 = vmatpush.bf16.msra.mxu0 0
      %1813 = vmatpush.bf16.msra.mxu0 0
      %1814 = vmatpush.bf16.msra.mxu0 0
      %1815 = vmatpush.bf16.msra.mxu0 %v1604
      %1816 = vmatpush.bf16.msra.mxu0 %v1487
      %1817 = vmatmul.bf16.gmra.mxu0 %v671
      %v1818 = vpop.f32.mrf.mxu0
      %v1819 = vadd.f32 0.0, %v1818
      %v1820 = vpop.f32.mrf.mxu0
      %v1821 = vadd.f32 0.0, %v1820
      %1822 = vdwg.mxu0
      %1823 = vmatpush.bf16.msra.mxu0 0
      %1824 = vmatpush.bf16.msra.mxu0 0
      %1825 = vmatpush.bf16.msra.mxu0 0
      %1826 = vmatpush.bf16.msra.mxu0 0
      %1827 = vmatpush.bf16.msra.mxu0 0
      %1828 = vmatpush.bf16.msra.mxu0 0
      %1829 = vmatpush.bf16.msra.mxu0 %v1607
      %1830 = vmatpush.bf16.msra.mxu0 %v1488
      %1831 = vmatmul.bf16.gmra.mxu0 %v671
      %v1832 = vpop.f32.mrf.mxu0
      %v1833 = vadd.f32 0.0, %v1832
      %v1834 = vpop.f32.mrf.mxu0
      %v1835 = vadd.f32 0.0, %v1834
      %1836 = vdwg.mxu0
      %1837 = vmatpush.bf16.msra.mxu0 0
      %1838 = vmatpush.bf16.msra.mxu0 0
      %1839 = vmatpush.bf16.msra.mxu0 0
      %1840 = vmatpush.bf16.msra.mxu0 0
      %1841 = vmatpush.bf16.msra.mxu0 0
      %1842 = vmatpush.bf16.msra.mxu0 0
      %1843 = vmatpush.bf16.msra.mxu0 %v1610
      %1844 = vmatpush.bf16.msra.mxu0 %v1489
      %1845 = vmatmul.bf16.gmra.mxu0 %v671
      %v1846 = vpop.f32.mrf.mxu0
      %v1847 = vadd.f32 0.0, %v1846
      %v1848 = vpop.f32.mrf.mxu0
      %v1849 = vadd.f32 0.0, %v1848
      %1850 = vdwg.mxu0
      %1851 = vmatpush.bf16.msra.mxu0 0
      %1852 = vmatpush.bf16.msra.mxu0 0
      %1853 = vmatpush.bf16.msra.mxu0 0
      %1854 = vmatpush.bf16.msra.mxu0 0
      %1855 = vmatpush.bf16.msra.mxu0 0
      %1856 = vmatpush.bf16.msra.mxu0 0
      %1857 = vmatpush.bf16.msra.mxu0 %v1613
      %1858 = vmatpush.bf16.msra.mxu0 %v1490
      %1859 = vmatmul.bf16.gmra.mxu0 %v671
      %v1860 = vpop.f32.mrf.mxu0
      %v1861 = vadd.f32 0.0, %v1860
      %v1862 = vpop.f32.mrf.mxu0
      %v1863 = vadd.f32 0.0, %v1862
      %1864 = vdwg.mxu0
      %1865 = vmatpush.bf16.msra.mxu0 0
      %1866 = vmatpush.bf16.msra.mxu0 0
      %1867 = vmatpush.bf16.msra.mxu0 0
      %1868 = vmatpush.bf16.msra.mxu0 0
      %1869 = vmatpush.bf16.msra.mxu0 0
      %1870 = vmatpush.bf16.msra.mxu0 0
      %1871 = vmatpush.bf16.msra.mxu0 %v1616
      %1872 = vmatpush.bf16.msra.mxu0 %v1491
      %1873 = vmatmul.bf16.gmra.mxu0 %v671
      %v1874 = vpop.f32.mrf.mxu0
      %v1875 = vadd.f32 0.0, %v1874
      %v1876 = vpop.f32.mrf.mxu0
      %v1877 = vadd.f32 0.0, %v1876
      %1878 = vdwg.mxu0
      %1879 = vmatpush.bf16.msra.mxu0 0
      %1880 = vmatpush.bf16.msra.mxu0 0
      %1881 = vmatpush.bf16.msra.mxu0 0
      %1882 = vmatpush.bf16.msra.mxu0 0
      %1883 = vmatpush.bf16.msra.mxu0 0
      %1884 = vmatpush.bf16.msra.mxu0 0
      %1885 = vmatpush.bf16.msra.mxu0 %v1619
      %1886 = vmatpush.bf16.msra.mxu0 %v1492
      %1887 = vmatmul.bf16.gmra.mxu0 %v671
      %v1888 = vpop.f32.mrf.mxu0
      %v1889 = vadd.f32 0.0, %v1888
      %v1890 = vpop.f32.mrf.mxu0
      %v1891 = vadd.f32 0.0, %v1890
      %1892 = vdwg.mxu0
      %1893 = vmatpush.bf16.msra.mxu0 0
      %1894 = vmatpush.bf16.msra.mxu0 0
      %1895 = vmatpush.bf16.msra.mxu0 0
      %1896 = vmatpush.bf16.msra.mxu0 0
      %1897 = vmatpush.bf16.msra.mxu0 0
      %1898 = vmatpush.bf16.msra.mxu0 0
      %1899 = vmatpush.bf16.msra.mxu0 %v1622
      %1900 = vmatpush.bf16.msra.mxu0 %v1493
      %1901 = vmatmul.bf16.gmra.mxu0 %v671
      %v1902 = vpop.f32.mrf.mxu0
      %v1903 = vadd.f32 0.0, %v1902
      %v1904 = vpop.f32.mrf.mxu0
      %v1905 = vadd.f32 0.0, %v1904
      %1906 = vdwg.mxu0
      %1907 = vmatpush.bf16.msra.mxu0 0
      %1908 = vmatpush.bf16.msra.mxu0 0
      %1909 = vmatpush.bf16.msra.mxu0 0
      %1910 = vmatpush.bf16.msra.mxu0 0
      %1911 = vmatpush.bf16.msra.mxu0 0
      %1912 = vmatpush.bf16.msra.mxu0 0
      %1913 = vmatpush.bf16.msra.mxu0 %v1625
      %1914 = vmatpush.bf16.msra.mxu0 %v1494
      %1915 = vmatmul.bf16.gmra.mxu0 %v671
      %v1916 = vpop.f32.mrf.mxu0
      %v1917 = vadd.f32 0.0, %v1916
      %v1918 = vpop.f32.mrf.mxu0
      %v1919 = vadd.f32 0.0, %v1918
      %1920 = vdwg.mxu0
      %1921 = vmatpush.bf16.msra.mxu0 0
      %1922 = vmatpush.bf16.msra.mxu0 0
      %1923 = vmatpush.bf16.msra.mxu0 0
      %1924 = vmatpush.bf16.msra.mxu0 0
      %1925 = vmatpush.bf16.msra.mxu0 0
      %1926 = vmatpush.bf16.msra.mxu0 0
      %1927 = vmatpush.bf16.msra.mxu0 %v1628
      %1928 = vmatpush.bf16.msra.mxu0 %v1495
      %1929 = vmatmul.bf16.gmra.mxu0 %v671
      %v1930 = vpop.f32.mrf.mxu0
      %v1931 = vadd.f32 0.0, %v1930
      %v1932 = vpop.f32.mrf.mxu0
      %v1933 = vadd.f32 0.0, %v1932
      %1934 = vdwg.mxu0
      %1935 = vmatpush.bf16.msra.mxu0 0
      %1936 = vmatpush.bf16.msra.mxu0 0
      %1937 = vmatpush.bf16.msra.mxu0 0
      %1938 = vmatpush.bf16.msra.mxu0 0
      %1939 = vmatpush.bf16.msra.mxu0 0
      %1940 = vmatpush.bf16.msra.mxu0 0
      %1941 = vmatpush.bf16.msra.mxu0 %v1631
      %1942 = vmatpush.bf16.msra.mxu0 %v1496
      %1943 = vmatmul.bf16.gmra.mxu0 %v671
      %v1944 = vpop.f32.mrf.mxu0
      %v1945 = vadd.f32 0.0, %v1944
      %v1946 = vpop.f32.mrf.mxu0
      %v1947 = vadd.f32 0.0, %v1946
      %1948 = vdwg.mxu0
      %1949 = vmatpush.bf16.msra.mxu0 0
      %1950 = vmatpush.bf16.msra.mxu0 0
      %1951 = vmatpush.bf16.msra.mxu0 0
      %1952 = vmatpush.bf16.msra.mxu0 0
      %1953 = vmatpush.bf16.msra.mxu0 0
      %1954 = vmatpush.bf16.msra.mxu0 0
      %1955 = vmatpush.bf16.msra.mxu0 %v1634
      %1956 = vmatpush.bf16.msra.mxu0 %v1497
      %1957 = vmatmul.bf16.gmra.mxu0 %v671
      %v1958 = vpop.f32.mrf.mxu0
      %v1959 = vadd.f32 0.0, %v1958
      %v1960 = vpop.f32.mrf.mxu0
      %v1961 = vadd.f32 0.0, %v1960
      %1962 = vdwg.mxu0
      %1963 = vmatpush.bf16.msra.mxu0 0
      %1964 = vmatpush.bf16.msra.mxu0 0
      %1965 = vmatpush.bf16.msra.mxu0 0
      %1966 = vmatpush.bf16.msra.mxu0 0
      %1967 = vmatpush.bf16.msra.mxu0 0
      %1968 = vmatpush.bf16.msra.mxu0 0
      %1969 = vmatpush.bf16.msra.mxu0 %v1637
      %1970 = vmatpush.bf16.msra.mxu0 %v1498
      %1971 = vmatmul.bf16.gmra.mxu0 %v671
      %v1972 = vpop.f32.mrf.mxu0
      %v1973 = vadd.f32 0.0, %v1972
      %v1974 = vpop.f32.mrf.mxu0
      %v1975 = vadd.f32 0.0, %v1974
      %1976 = vdwg.mxu0
      %1977 = vmatpush.bf16.msra.mxu0 0
      %1978 = vmatpush.bf16.msra.mxu0 0
      %1979 = vmatpush.bf16.msra.mxu0 0
      %1980 = vmatpush.bf16.msra.mxu0 0
      %1981 = vmatpush.bf16.msra.mxu0 0
      %1982 = vmatpush.bf16.msra.mxu0 0
      %1983 = vmatpush.bf16.msra.mxu0 %v1640
      %1984 = vmatpush.bf16.msra.mxu0 %v1499
      %1985 = vmatmul.bf16.gmra.mxu0 %v671
      %v1986 = vpop.f32.mrf.mxu0
      %v1987 = vadd.f32 0.0, %v1986
      %v1988 = vpop.f32.mrf.mxu0
      %v1989 = vadd.f32 0.0, %v1988
      %1990 = vdwg.mxu0
      %1991 = vmatpush.bf16.msra.mxu0 0
      %1992 = vmatpush.bf16.msra.mxu0 0
      %1993 = vmatpush.bf16.msra.mxu0 0
      %1994 = vmatpush.bf16.msra.mxu0 0
      %1995 = vmatpush.bf16.msra.mxu0 0
      %1996 = vmatpush.bf16.msra.mxu0 0
      %1997 = vmatpush.bf16.msra.mxu0 %v1643
      %1998 = vmatpush.bf16.msra.mxu0 %v1500
      %1999 = vmatmul.bf16.gmra.mxu0 %v671
      %v2000 = vpop.f32.mrf.mxu0
      %v2001 = vadd.f32 0.0, %v2000
      %v2002 = vpop.f32.mrf.mxu0
      %v2003 = vadd.f32 0.0, %v2002
      %2004 = vdwg.mxu0
      %2005 = vmatpush.bf16.msra.mxu0 0
      %2006 = vmatpush.bf16.msra.mxu0 0
      %2007 = vmatpush.bf16.msra.mxu0 0
      %2008 = vmatpush.bf16.msra.mxu0 0
      %2009 = vmatpush.bf16.msra.mxu0 0
      %2010 = vmatpush.bf16.msra.mxu0 0
      %2011 = vmatpush.bf16.msra.mxu0 %v1646
      %2012 = vmatpush.bf16.msra.mxu0 %v1501
      %2013 = vmatmul.bf16.gmra.mxu0 %v671
      %v2014 = vpop.f32.mrf.mxu0
      %v2015 = vadd.f32 0.0, %v2014
      %v2016 = vpop.f32.mrf.mxu0
      %v2017 = vadd.f32 0.0, %v2016
      %2018 = vdwg.mxu0
      %2019 = vmatpush.bf16.msra.mxu0 0
      %2020 = vmatpush.bf16.msra.mxu0 0
      %2021 = vmatpush.bf16.msra.mxu0 0
      %2022 = vmatpush.bf16.msra.mxu0 0
      %2023 = vmatpush.bf16.msra.mxu0 0
      %2024 = vmatpush.bf16.msra.mxu0 0
      %2025 = vmatpush.bf16.msra.mxu0 %v1649
      %2026 = vmatpush.bf16.msra.mxu0 %v1502
      %2027 = vmatmul.bf16.gmra.mxu0 %v671
      %v2028 = vpop.f32.mrf.mxu0
      %v2029 = vadd.f32 0.0, %v2028
      %v2030 = vpop.f32.mrf.mxu0
      %v2031 = vadd.f32 0.0, %v2030
      %2032 = vdwg.mxu0
      %2033 = vmatpush.bf16.msra.mxu0 0
      %2034 = vmatpush.bf16.msra.mxu0 0
      %2035 = vmatpush.bf16.msra.mxu0 0
      %2036 = vmatpush.bf16.msra.mxu0 0
      %2037 = vmatpush.bf16.msra.mxu0 0
      %2038 = vmatpush.bf16.msra.mxu0 0
      %2039 = vmatpush.bf16.msra.mxu0 %v1652
      %2040 = vmatpush.bf16.msra.mxu0 %v1503
      %2041 = vmatmul.bf16.gmra.mxu0 %v671
      %v2042 = vpop.f32.mrf.mxu0
      %v2043 = vadd.f32 0.0, %v2042
      %v2044 = vpop.f32.mrf.mxu0
      %v2045 = vadd.f32 0.0, %v2044
      %2046 = vdwg.mxu0
      %2047 = vmatpush.bf16.msra.mxu0 0
      %2048 = vmatpush.bf16.msra.mxu0 0
      %2049 = vmatpush.bf16.msra.mxu0 0
      %2050 = vmatpush.bf16.msra.mxu0 0
      %2051 = vmatpush.bf16.msra.mxu0 0
      %2052 = vmatpush.bf16.msra.mxu0 0
      %2053 = vmatpush.bf16.msra.mxu0 %v1655
      %2054 = vmatpush.bf16.msra.mxu0 %v1504
      %2055 = vmatmul.bf16.gmra.mxu0 %v671
      %v2056 = vpop.f32.mrf.mxu0
      %v2057 = vadd.f32 0.0, %v2056
      %v2058 = vpop.f32.mrf.mxu0
      %v2059 = vadd.f32 0.0, %v2058
      %2060 = vdwg.mxu0
      %2061 = vmatpush.bf16.msra.mxu0 0
      %2062 = vmatpush.bf16.msra.mxu0 0
      %2063 = vmatpush.bf16.msra.mxu0 0
      %2064 = vmatpush.bf16.msra.mxu0 0
      %2065 = vmatpush.bf16.msra.mxu0 0
      %2066 = vmatpush.bf16.msra.mxu0 0
      %2067 = vmatpush.bf16.msra.mxu0 %v1658
      %2068 = vmatpush.bf16.msra.mxu0 %v1505
      %2069 = vmatmul.bf16.gmra.mxu0 %v671
      %v2070 = vpop.f32.mrf.mxu0
      %v2071 = vadd.f32 0.0, %v2070
      %v2072 = vpop.f32.mrf.mxu0
      %v2073 = vadd.f32 0.0, %v2072
      %2074 = vdwg.mxu0
      %2075 = vmatpush.bf16.msra.mxu0 0
      %2076 = vmatpush.bf16.msra.mxu0 0
      %2077 = vmatpush.bf16.msra.mxu0 0
      %2078 = vmatpush.bf16.msra.mxu0 0
      %2079 = vmatpush.bf16.msra.mxu0 0
      %2080 = vmatpush.bf16.msra.mxu0 0
      %2081 = vmatpush.bf16.msra.mxu0 %v1661
      %2082 = vmatpush.bf16.msra.mxu0 %v1506
      %2083 = vmatmul.bf16.gmra.mxu0 %v671
      %v2084 = vpop.f32.mrf.mxu0
      %v2085 = vadd.f32 0.0, %v2084
      %v2086 = vpop.f32.mrf.mxu0
      %v2087 = vadd.f32 0.0, %v2086
      %2088 = vdwg.mxu0
      %2089 = vmatpush.bf16.msra.mxu0 0
      %2090 = vmatpush.bf16.msra.mxu0 0
      %2091 = vmatpush.bf16.msra.mxu0 0
      %2092 = vmatpush.bf16.msra.mxu0 0
      %2093 = vmatpush.bf16.msra.mxu0 0
      %2094 = vmatpush.bf16.msra.mxu0 0
      %2095 = vmatpush.bf16.msra.mxu0 %v1664
      %2096 = vmatpush.bf16.msra.mxu0 %v1507
      %2097 = vmatmul.bf16.gmra.mxu0 %v671
      %v2098 = vpop.f32.mrf.mxu0
      %v2099 = vadd.f32 0.0, %v2098
      %v2100 = vpop.f32.mrf.mxu0
      %v2101 = vadd.f32 0.0, %v2100
      %2102 = vdwg.mxu0
      %2103 = vmatpush.bf16.msra.mxu0 0
      %2104 = vmatpush.bf16.msra.mxu0 0
      %2105 = vmatpush.bf16.msra.mxu0 0
      %2106 = vmatpush.bf16.msra.mxu0 0
      %2107 = vmatpush.bf16.msra.mxu0 0
      %2108 = vmatpush.bf16.msra.mxu0 0
      %2109 = vmatpush.bf16.msra.mxu0 %v1667
      %2110 = vmatpush.bf16.msra.mxu0 %v1508
      %2111 = vmatmul.bf16.gmra.mxu0 %v671
      %v2112 = vpop.f32.mrf.mxu0
      %v2113 = vadd.f32 0.0, %v2112
      %v2114 = vpop.f32.mrf.mxu0
      %v2115 = vadd.f32 0.0, %v2114
      %2116 = vdwg.mxu0
      %v2117 = vld [vmem:[%s297] sm:$0x77]
      %v2118 = vld [vmem:[%s297 + $0x8] sm:$0x77]
      %v2119 = vld [vmem:[%s297 + $0x10] sm:$0x77]
      %v2120 = vld [vmem:[%s297 + $0x18] sm:$0x77]
      %v2121 = vld [vmem:[%s297 + $0x20] sm:$0x77]
      %v2122 = vld [vmem:[%s297 + $0x28] sm:$0x77]
      %v2123 = vld [vmem:[%s297 + $0x30] sm:$0x77]
      %v2124 = vld [vmem:[%s297 + $0x38] sm:$0x77]
      %v2125 = vld [vmem:[%s297 + $0x40] sm:$0x77]
      %v2126 = vld [vmem:[%s297 + $0x48] sm:$0x77]
      %v2127 = vld [vmem:[%s297 + $0x50] sm:$0x77]
      %v2128 = vld [vmem:[%s297 + $0x58] sm:$0x77]
      %v2129 = vld [vmem:[%s297 + $0x60] sm:$0x77]
      %v2130 = vld [vmem:[%s297 + $0x68] sm:$0x77]
      %v2131 = vld [vmem:[%s297 + $0x70] sm:$0x77]
      %v2132 = vld [vmem:[%s297 + $0x78] sm:$0x77]
      %v2149 = vperm.slane %v2117, 0
      %v2150 = vperm.slane %v2117, 4
      %v2151 = vperm.slane %v2118, 0
      %v2152 = vperm.slane %v2118, 4
      %v2153 = vperm.slane %v2119, 0
      %v2154 = vperm.slane %v2119, 4
      %v2155 = vperm.slane %v2120, 0
      %v2156 = vperm.slane %v2120, 4
      %v2157 = vperm.slane %v2121, 0
      %v2158 = vperm.slane %v2121, 4
      %v2159 = vperm.slane %v2122, 0
      %v2160 = vperm.slane %v2122, 4
      %v2161 = vperm.slane %v2123, 0
      %v2162 = vperm.slane %v2123, 4
      %v2163 = vperm.slane %v2124, 0
      %v2164 = vperm.slane %v2124, 4
      %v2165 = vperm.slane %v2125, 0
      %v2166 = vperm.slane %v2125, 4
      %v2167 = vperm.slane %v2126, 0
      %v2168 = vperm.slane %v2126, 4
      %v2169 = vperm.slane %v2127, 0
      %v2170 = vperm.slane %v2127, 4
      %v2171 = vperm.slane %v2128, 0
      %v2172 = vperm.slane %v2128, 4
      %v2173 = vperm.slane %v2129, 0
      %v2174 = vperm.slane %v2129, 4
      %v2175 = vperm.slane %v2130, 0
      %v2176 = vperm.slane %v2130, 4
      %v2177 = vperm.slane %v2131, 0
      %v2178 = vperm.slane %v2131, 4
      %v2179 = vperm.slane %v2132, 0
      %v2180 = vperm.slane %v2132, 4
      %v2213 = vperm.slane %v2149, 0
      %v2214 = vperm.slane %v2150, 0
      %v2215 = vperm.slane %v2151, 0
      %v2216 = vperm.slane %v2152, 0
      %v2217 = vperm.slane %v2153, 0
      %v2218 = vperm.slane %v2154, 0
      %v2219 = vperm.slane %v2155, 0
      %v2220 = vperm.slane %v2156, 0
      %v2221 = vperm.slane %v2157, 0
      %v2222 = vperm.slane %v2158, 0
      %v2223 = vperm.slane %v2159, 0
      %v2224 = vperm.slane %v2160, 0
      %v2225 = vperm.slane %v2161, 0
      %v2226 = vperm.slane %v2162, 0
      %v2227 = vperm.slane %v2163, 0
      %v2228 = vperm.slane %v2164, 0
      %v2229 = vperm.slane %v2165, 0
      %v2230 = vperm.slane %v2166, 0
      %v2231 = vperm.slane %v2167, 0
      %v2232 = vperm.slane %v2168, 0
      %v2233 = vperm.slane %v2169, 0
      %v2234 = vperm.slane %v2170, 0
      %v2235 = vperm.slane %v2171, 0
      %v2236 = vperm.slane %v2172, 0
      %v2237 = vperm.slane %v2173, 0
      %v2238 = vperm.slane %v2174, 0
      %v2239 = vperm.slane %v2175, 0
      %v2240 = vperm.slane %v2176, 0
      %v2241 = vperm.slane %v2177, 0
      %v2242 = vperm.slane %v2178, 0
      %v2243 = vperm.slane %v2179, 0
      %v2244 = vperm.slane %v2180, 0
      %v2245 = vmul.f32 %v1679, %v2213
      %v2246 = vmul.f32 %v1693, %v2214
      %v2247 = vmul.f32 %v1707, %v2215
      %v2248 = vmul.f32 %v1721, %v2216
      %v2249 = vmul.f32 %v1735, %v2217
      %v2250 = vmul.f32 %v1749, %v2218
      %v2251 = vmul.f32 %v1763, %v2219
      %v2252 = vmul.f32 %v1777, %v2220
      %v2253 = vmul.f32 %v1791, %v2221
      %v2254 = vmul.f32 %v1805, %v2222
      %v2255 = vmul.f32 %v1819, %v2223
      %v2256 = vmul.f32 %v1833, %v2224
      %v2257 = vmul.f32 %v1847, %v2225
      %v2258 = vmul.f32 %v1861, %v2226
      %v2259 = vmul.f32 %v1875, %v2227
      %v2260 = vmul.f32 %v1889, %v2228
      %v2261 = vmul.f32 %v1903, %v2229
      %v2262 = vmul.f32 %v1917, %v2230
      %v2263 = vmul.f32 %v1931, %v2231
      %v2264 = vmul.f32 %v1945, %v2232
      %v2265 = vmul.f32 %v1959, %v2233
      %v2266 = vmul.f32 %v1973, %v2234
      %v2267 = vmul.f32 %v1987, %v2235
      %v2268 = vmul.f32 %v2001, %v2236
      %v2269 = vmul.f32 %v2015, %v2237
      %v2270 = vmul.f32 %v2029, %v2238
      %v2271 = vmul.f32 %v2043, %v2239
      %v2272 = vmul.f32 %v2057, %v2240
      %v2273 = vmul.f32 %v2071, %v2241
      %v2274 = vmul.f32 %v2085, %v2242
      %v2275 = vmul.f32 %v2099, %v2243
      %v2276 = vmul.f32 %v2113, %v2244
      %v2277 = vmul.f32 %v1681, %v2213
      %v2278 = vmul.f32 %v1695, %v2214
      %v2279 = vmul.f32 %v1709, %v2215
      %v2280 = vmul.f32 %v1723, %v2216
      %v2281 = vmul.f32 %v1737, %v2217
      %v2282 = vmul.f32 %v1751, %v2218
      %v2283 = vmul.f32 %v1765, %v2219
      %v2284 = vmul.f32 %v1779, %v2220
      %v2285 = vmul.f32 %v1793, %v2221
      %v2286 = vmul.f32 %v1807, %v2222
      %v2287 = vmul.f32 %v1821, %v2223
      %v2288 = vmul.f32 %v1835, %v2224
      %v2289 = vmul.f32 %v1849, %v2225
      %v2290 = vmul.f32 %v1863, %v2226
      %v2291 = vmul.f32 %v1877, %v2227
      %v2292 = vmul.f32 %v1891, %v2228
      %v2293 = vmul.f32 %v1905, %v2229
      %v2294 = vmul.f32 %v1919, %v2230
      %v2295 = vmul.f32 %v1933, %v2231
      %v2296 = vmul.f32 %v1947, %v2232
      %v2297 = vmul.f32 %v1961, %v2233
      %v2298 = vmul.f32 %v1975, %v2234
      %v2299 = vmul.f32 %v1989, %v2235
      %v2300 = vmul.f32 %v2003, %v2236
      %v2301 = vmul.f32 %v2017, %v2237
      %v2302 = vmul.f32 %v2031, %v2238
      %v2303 = vmul.f32 %v2045, %v2239
      %v2304 = vmul.f32 %v2059, %v2240
      %v2305 = vmul.f32 %v2073, %v2241
      %v2306 = vmul.f32 %v2087, %v2242
      %v2307 = vmul.f32 %v2101, %v2243
      %v2308 = vmul.f32 %v2115, %v2244
      %v2309 = vperm.slane %v2117, 1
      %v2310 = vperm.slane %v2117, 5
      %v2311 = vperm.slane %v2118, 1
      %v2312 = vperm.slane %v2118, 5
      %v2313 = vperm.slane %v2119, 1
      %v2314 = vperm.slane %v2119, 5
      %v2315 = vperm.slane %v2120, 1
      %v2316 = vperm.slane %v2120, 5
      %v2317 = vperm.slane %v2121, 1
      %v2318 = vperm.slane %v2121, 5
      %v2319 = vperm.slane %v2122, 1
      %v2320 = vperm.slane %v2122, 5
      %v2321 = vperm.slane %v2123, 1
      %v2322 = vperm.slane %v2123, 5
      %v2323 = vperm.slane %v2124, 1
      %v2324 = vperm.slane %v2124, 5
      %v2325 = vperm.slane %v2125, 1
      %v2326 = vperm.slane %v2125, 5
      %v2327 = vperm.slane %v2126, 1
      %v2328 = vperm.slane %v2126, 5
      %v2329 = vperm.slane %v2127, 1
      %v2330 = vperm.slane %v2127, 5
      %v2331 = vperm.slane %v2128, 1
      %v2332 = vperm.slane %v2128, 5
      %v2333 = vperm.slane %v2129, 1
      %v2334 = vperm.slane %v2129, 5
      %v2335 = vperm.slane %v2130, 1
      %v2336 = vperm.slane %v2130, 5
      %v2337 = vperm.slane %v2131, 1
      %v2338 = vperm.slane %v2131, 5
      %v2339 = vperm.slane %v2132, 1
      %v2340 = vperm.slane %v2132, 5
      %v2373 = vperm.slane %v2309, 1
      %v2374 = vperm.slane %v2310, 1
      %v2375 = vperm.slane %v2311, 1
      %v2376 = vperm.slane %v2312, 1
      %v2377 = vperm.slane %v2313, 1
      %v2378 = vperm.slane %v2314, 1
      %v2379 = vperm.slane %v2315, 1
      %v2380 = vperm.slane %v2316, 1
      %v2381 = vperm.slane %v2317, 1
      %v2382 = vperm.slane %v2318, 1
      %v2383 = vperm.slane %v2319, 1
      %v2384 = vperm.slane %v2320, 1
      %v2385 = vperm.slane %v2321, 1
      %v2386 = vperm.slane %v2322, 1
      %v2387 = vperm.slane %v2323, 1
      %v2388 = vperm.slane %v2324, 1
      %v2389 = vperm.slane %v2325, 1
      %v2390 = vperm.slane %v2326, 1
      %v2391 = vperm.slane %v2327, 1
      %v2392 = vperm.slane %v2328, 1
      %v2393 = vperm.slane %v2329, 1
      %v2394 = vperm.slane %v2330, 1
      %v2395 = vperm.slane %v2331, 1
      %v2396 = vperm.slane %v2332, 1
      %v2397 = vperm.slane %v2333, 1
      %v2398 = vperm.slane %v2334, 1
      %v2399 = vperm.slane %v2335, 1
      %v2400 = vperm.slane %v2336, 1
      %v2401 = vperm.slane %v2337, 1
      %v2402 = vperm.slane %v2338, 1
      %v2403 = vperm.slane %v2339, 1
      %v2404 = vperm.slane %v2340, 1
      %v2405 = vmul.f32 %v783, %v2373
      %v2406 = vmul.f32 %v797, %v2374
      %v2407 = vmul.f32 %v811, %v2375
      %v2408 = vmul.f32 %v825, %v2376
      %v2409 = vmul.f32 %v839, %v2377
      %v2410 = vmul.f32 %v853, %v2378
      %v2411 = vmul.f32 %v867, %v2379
      %v2412 = vmul.f32 %v881, %v2380
      %v2413 = vmul.f32 %v895, %v2381
      %v2414 = vmul.f32 %v909, %v2382
      %v2415 = vmul.f32 %v923, %v2383
      %v2416 = vmul.f32 %v937, %v2384
      %v2417 = vmul.f32 %v951, %v2385
      %v2418 = vmul.f32 %v965, %v2386
      %v2419 = vmul.f32 %v979, %v2387
      %v2420 = vmul.f32 %v993, %v2388
      %v2421 = vmul.f32 %v1007, %v2389
      %v2422 = vmul.f32 %v1021, %v2390
      %v2423 = vmul.f32 %v1035, %v2391
      %v2424 = vmul.f32 %v1049, %v2392
      %v2425 = vmul.f32 %v1063, %v2393
      %v2426 = vmul.f32 %v1077, %v2394
      %v2427 = vmul.f32 %v1091, %v2395
      %v2428 = vmul.f32 %v1105, %v2396
      %v2429 = vmul.f32 %v1119, %v2397
      %v2430 = vmul.f32 %v1133, %v2398
      %v2431 = vmul.f32 %v1147, %v2399
      %v2432 = vmul.f32 %v1161, %v2400
      %v2433 = vmul.f32 %v1175, %v2401
      %v2434 = vmul.f32 %v1189, %v2402
      %v2435 = vmul.f32 %v1203, %v2403
      %v2436 = vmul.f32 %v1217, %v2404
      %v2437 = vmul.f32 %v785, %v2373
      %v2438 = vmul.f32 %v799, %v2374
      %v2439 = vmul.f32 %v813, %v2375
      %v2440 = vmul.f32 %v827, %v2376
      %v2441 = vmul.f32 %v841, %v2377
      %v2442 = vmul.f32 %v855, %v2378
      %v2443 = vmul.f32 %v869, %v2379
      %v2444 = vmul.f32 %v883, %v2380
      %v2445 = vmul.f32 %v897, %v2381
      %v2446 = vmul.f32 %v911, %v2382
      %v2447 = vmul.f32 %v925, %v2383
      %v2448 = vmul.f32 %v939, %v2384
      %v2449 = vmul.f32 %v953, %v2385
      %v2450 = vmul.f32 %v967, %v2386
      %v2451 = vmul.f32 %v981, %v2387
      %v2452 = vmul.f32 %v995, %v2388
      %v2453 = vmul.f32 %v1009, %v2389
      %v2454 = vmul.f32 %v1023, %v2390
      %v2455 = vmul.f32 %v1037, %v2391
      %v2456 = vmul.f32 %v1051, %v2392
      %v2457 = vmul.f32 %v1065, %v2393
      %v2458 = vmul.f32 %v1079, %v2394
      %v2459 = vmul.f32 %v1093, %v2395
      %v2460 = vmul.f32 %v1107, %v2396
      %v2461 = vmul.f32 %v1121, %v2397
      %v2462 = vmul.f32 %v1135, %v2398
      %v2463 = vmul.f32 %v1149, %v2399
      %v2464 = vmul.f32 %v1163, %v2400
      %v2465 = vmul.f32 %v1177, %v2401
      %v2466 = vmul.f32 %v1191, %v2402
      %v2467 = vmul.f32 %v1205, %v2403
      %v2468 = vmul.f32 %v1219, %v2404
      %v2469 = vsub.f32 %v2245, %v2405
      %v2470 = vsub.f32 %v2246, %v2406
      %v2471 = vsub.f32 %v2247, %v2407
      %v2472 = vsub.f32 %v2248, %v2408
      %v2473 = vsub.f32 %v2249, %v2409
      %v2474 = vsub.f32 %v2250, %v2410
      %v2475 = vsub.f32 %v2251, %v2411
      %v2476 = vsub.f32 %v2252, %v2412
      %v2477 = vsub.f32 %v2253, %v2413
      %v2478 = vsub.f32 %v2254, %v2414
      %v2479 = vsub.f32 %v2255, %v2415
      %v2480 = vsub.f32 %v2256, %v2416
      %v2481 = vsub.f32 %v2257, %v2417
      %v2482 = vsub.f32 %v2258, %v2418
      %v2483 = vsub.f32 %v2259, %v2419
      %v2484 = vsub.f32 %v2260, %v2420
      %v2485 = vsub.f32 %v2261, %v2421
      %v2486 = vsub.f32 %v2262, %v2422
      %v2487 = vsub.f32 %v2263, %v2423
      %v2488 = vsub.f32 %v2264, %v2424
      %v2489 = vsub.f32 %v2265, %v2425
      %v2490 = vsub.f32 %v2266, %v2426
      %v2491 = vsub.f32 %v2267, %v2427
      %v2492 = vsub.f32 %v2268, %v2428
      %v2493 = vsub.f32 %v2269, %v2429
      %v2494 = vsub.f32 %v2270, %v2430
      %v2495 = vsub.f32 %v2271, %v2431
      %v2496 = vsub.f32 %v2272, %v2432
      %v2497 = vsub.f32 %v2273, %v2433
      %v2498 = vsub.f32 %v2274, %v2434
      %v2499 = vsub.f32 %v2275, %v2435
      %v2500 = vsub.f32 %v2276, %v2436
      %v2501 = vsub.f32 %v2277, %v2437
      %v2502 = vsub.f32 %v2278, %v2438
      %v2503 = vsub.f32 %v2279, %v2439
      %v2504 = vsub.f32 %v2280, %v2440
      %v2505 = vsub.f32 %v2281, %v2441
      %v2506 = vsub.f32 %v2282, %v2442
      %v2507 = vsub.f32 %v2283, %v2443
      %v2508 = vsub.f32 %v2284, %v2444
      %v2509 = vsub.f32 %v2285, %v2445
      %v2510 = vsub.f32 %v2286, %v2446
      %v2511 = vsub.f32 %v2287, %v2447
      %v2512 = vsub.f32 %v2288, %v2448
      %v2513 = vsub.f32 %v2289, %v2449
      %v2514 = vsub.f32 %v2290, %v2450
      %v2515 = vsub.f32 %v2291, %v2451
      %v2516 = vsub.f32 %v2292, %v2452
      %v2517 = vsub.f32 %v2293, %v2453
      %v2518 = vsub.f32 %v2294, %v2454
      %v2519 = vsub.f32 %v2295, %v2455
      %v2520 = vsub.f32 %v2296, %v2456
      %v2521 = vsub.f32 %v2297, %v2457
      %v2522 = vsub.f32 %v2298, %v2458
      %v2523 = vsub.f32 %v2299, %v2459
      %v2524 = vsub.f32 %v2300, %v2460
      %v2525 = vsub.f32 %v2301, %v2461
      %v2526 = vsub.f32 %v2302, %v2462
      %v2527 = vsub.f32 %v2303, %v2463
      %v2528 = vsub.f32 %v2304, %v2464
      %v2529 = vsub.f32 %v2305, %v2465
      %v2530 = vsub.f32 %v2306, %v2466
      %v2531 = vsub.f32 %v2307, %v2467
      %v2532 = vsub.f32 %v2308, %v2468
      %v2533 = vperm.slane %v2117, 2
      %v2534 = vperm.slane %v2117, 6
      %v2535 = vperm.slane %v2118, 2
      %v2536 = vperm.slane %v2118, 6
      %v2537 = vperm.slane %v2119, 2
      %v2538 = vperm.slane %v2119, 6
      %v2539 = vperm.slane %v2120, 2
      %v2540 = vperm.slane %v2120, 6
      %v2541 = vperm.slane %v2121, 2
      %v2542 = vperm.slane %v2121, 6
      %v2543 = vperm.slane %v2122, 2
      %v2544 = vperm.slane %v2122, 6
      %v2545 = vperm.slane %v2123, 2
      %v2546 = vperm.slane %v2123, 6
      %v2547 = vperm.slane %v2124, 2
      %v2548 = vperm.slane %v2124, 6
      %v2549 = vperm.slane %v2125, 2
      %v2550 = vperm.slane %v2125, 6
      %v2551 = vperm.slane %v2126, 2
      %v2552 = vperm.slane %v2126, 6
      %v2553 = vperm.slane %v2127, 2
      %v2554 = vperm.slane %v2127, 6
      %v2555 = vperm.slane %v2128, 2
      %v2556 = vperm.slane %v2128, 6
      %v2557 = vperm.slane %v2129, 2
      %v2558 = vperm.slane %v2129, 6
      %v2559 = vperm.slane %v2130, 2
      %v2560 = vperm.slane %v2130, 6
      %v2561 = vperm.slane %v2131, 2
      %v2562 = vperm.slane %v2131, 6
      %v2563 = vperm.slane %v2132, 2
      %v2564 = vperm.slane %v2132, 6
      %v2597 = vperm.slane %v2533, 2
      %v2598 = vperm.slane %v2534, 2
      %v2599 = vperm.slane %v2535, 2
      %v2600 = vperm.slane %v2536, 2
      %v2601 = vperm.slane %v2537, 2
      %v2602 = vperm.slane %v2538, 2
      %v2603 = vperm.slane %v2539, 2
      %v2604 = vperm.slane %v2540, 2
      %v2605 = vperm.slane %v2541, 2
      %v2606 = vperm.slane %v2542, 2
      %v2607 = vperm.slane %v2543, 2
      %v2608 = vperm.slane %v2544, 2
      %v2609 = vperm.slane %v2545, 2
      %v2610 = vperm.slane %v2546, 2
      %v2611 = vperm.slane %v2547, 2
      %v2612 = vperm.slane %v2548, 2
      %v2613 = vperm.slane %v2549, 2
      %v2614 = vperm.slane %v2550, 2
      %v2615 = vperm.slane %v2551, 2
      %v2616 = vperm.slane %v2552, 2
      %v2617 = vperm.slane %v2553, 2
      %v2618 = vperm.slane %v2554, 2
      %v2619 = vperm.slane %v2555, 2
      %v2620 = vperm.slane %v2556, 2
      %v2621 = vperm.slane %v2557, 2
      %v2622 = vperm.slane %v2558, 2
      %v2623 = vperm.slane %v2559, 2
      %v2624 = vperm.slane %v2560, 2
      %v2625 = vperm.slane %v2561, 2
      %v2626 = vperm.slane %v2562, 2
      %v2627 = vperm.slane %v2563, 2
      %v2628 = vperm.slane %v2564, 2
      %v2629 = vmul.f32 %v2469, %v2597
      %v2630 = vmul.f32 %v2470, %v2598
      %v2631 = vmul.f32 %v2471, %v2599
      %v2632 = vmul.f32 %v2472, %v2600
      %v2633 = vmul.f32 %v2473, %v2601
      %v2634 = vmul.f32 %v2474, %v2602
      %v2635 = vmul.f32 %v2475, %v2603
      %v2636 = vmul.f32 %v2476, %v2604
      %v2637 = vmul.f32 %v2477, %v2605
      %v2638 = vmul.f32 %v2478, %v2606
      %v2639 = vmul.f32 %v2479, %v2607
      %v2640 = vmul.f32 %v2480, %v2608
      %v2641 = vmul.f32 %v2481, %v2609
      %v2642 = vmul.f32 %v2482, %v2610
      %v2643 = vmul.f32 %v2483, %v2611
      %v2644 = vmul.f32 %v2484, %v2612
      %v2645 = vmul.f32 %v2485, %v2613
      %v2646 = vmul.f32 %v2486, %v2614
      %v2647 = vmul.f32 %v2487, %v2615
      %v2648 = vmul.f32 %v2488, %v2616
      %v2649 = vmul.f32 %v2489, %v2617
      %v2650 = vmul.f32 %v2490, %v2618
      %v2651 = vmul.f32 %v2491, %v2619
      %v2652 = vmul.f32 %v2492, %v2620
      %v2653 = vmul.f32 %v2493, %v2621
      %v2654 = vmul.f32 %v2494, %v2622
      %v2655 = vmul.f32 %v2495, %v2623
      %v2656 = vmul.f32 %v2496, %v2624
      %v2657 = vmul.f32 %v2497, %v2625
      %v2658 = vmul.f32 %v2498, %v2626
      %v2659 = vmul.f32 %v2499, %v2627
      %v2660 = vmul.f32 %v2500, %v2628
      %v2661 = vmul.f32 %v2501, %v2597
      %v2662 = vmul.f32 %v2502, %v2598
      %v2663 = vmul.f32 %v2503, %v2599
      %v2664 = vmul.f32 %v2504, %v2600
      %v2665 = vmul.f32 %v2505, %v2601
      %v2666 = vmul.f32 %v2506, %v2602
      %v2667 = vmul.f32 %v2507, %v2603
      %v2668 = vmul.f32 %v2508, %v2604
      %v2669 = vmul.f32 %v2509, %v2605
      %v2670 = vmul.f32 %v2510, %v2606
      %v2671 = vmul.f32 %v2511, %v2607
      %v2672 = vmul.f32 %v2512, %v2608
      %v2673 = vmul.f32 %v2513, %v2609
      %v2674 = vmul.f32 %v2514, %v2610
      %v2675 = vmul.f32 %v2515, %v2611
      %v2676 = vmul.f32 %v2516, %v2612
      %v2677 = vmul.f32 %v2517, %v2613
      %v2678 = vmul.f32 %v2518, %v2614
      %v2679 = vmul.f32 %v2519, %v2615
      %v2680 = vmul.f32 %v2520, %v2616
      %v2681 = vmul.f32 %v2521, %v2617
      %v2682 = vmul.f32 %v2522, %v2618
      %v2683 = vmul.f32 %v2523, %v2619
      %v2684 = vmul.f32 %v2524, %v2620
      %v2685 = vmul.f32 %v2525, %v2621
      %v2686 = vmul.f32 %v2526, %v2622
      %v2687 = vmul.f32 %v2527, %v2623
      %v2688 = vmul.f32 %v2528, %v2624
      %v2689 = vmul.f32 %v2529, %v2625
      %v2690 = vmul.f32 %v2530, %v2626
      %v2691 = vmul.f32 %v2531, %v2627
      %v2692 = vmul.f32 %v2532, %v2628
      %2693 = vst [vmem:[%s307] sm:$0xff] %v2629
      %2694 = vst [vmem:[%s307 + $0x8] sm:$0xff] %v2630
      %2695 = vst [vmem:[%s307 + $0x10] sm:$0xff] %v2631
      %2696 = vst [vmem:[%s307 + $0x18] sm:$0xff] %v2632
      %2697 = vst [vmem:[%s307 + $0x20] sm:$0xff] %v2633
      %2698 = vst [vmem:[%s307 + $0x28] sm:$0xff] %v2634
      %2699 = vst [vmem:[%s307 + $0x30] sm:$0xff] %v2635
      %2700 = vst [vmem:[%s307 + $0x38] sm:$0xff] %v2636
      %2701 = vst [vmem:[%s307 + $0x40] sm:$0xff] %v2637
      %2702 = vst [vmem:[%s307 + $0x48] sm:$0xff] %v2638
      %2703 = vst [vmem:[%s307 + $0x50] sm:$0xff] %v2639
      %2704 = vst [vmem:[%s307 + $0x58] sm:$0xff] %v2640
      %2705 = vst [vmem:[%s307 + $0x60] sm:$0xff] %v2641
      %2706 = vst [vmem:[%s307 + $0x68] sm:$0xff] %v2642
      %2707 = vst [vmem:[%s307 + $0x70] sm:$0xff] %v2643
      %2708 = vst [vmem:[%s307 + $0x78] sm:$0xff] %v2644
      %2709 = vst [vmem:[%s307 + $0x80] sm:$0xff] %v2645
      %2710 = vst [vmem:[%s307 + $0x88] sm:$0xff] %v2646
      %2711 = vst [vmem:[%s307 + $0x90] sm:$0xff] %v2647
      %2712 = vst [vmem:[%s307 + $0x98] sm:$0xff] %v2648
      %2713 = vst [vmem:[%s307 + $0xa0] sm:$0xff] %v2649
      %2714 = vst [vmem:[%s307 + $0xa8] sm:$0xff] %v2650
      %2715 = vst [vmem:[%s307 + $0xb0] sm:$0xff] %v2651
      %2716 = vst [vmem:[%s307 + $0xb8] sm:$0xff] %v2652
      %2717 = vst [vmem:[%s307 + $0xc0] sm:$0xff] %v2653
      %2718 = vst [vmem:[%s307 + $0xc8] sm:$0xff] %v2654
      %2719 = vst [vmem:[%s307 + $0xd0] sm:$0xff] %v2655
      %2720 = vst [vmem:[%s307 + $0xd8] sm:$0xff] %v2656
      %2721 = vst [vmem:[%s307 + $0xe0] sm:$0xff] %v2657
      %2722 = vst [vmem:[%s307 + $0xe8] sm:$0xff] %v2658
      %2723 = vst [vmem:[%s307 + $0xf0] sm:$0xff] %v2659
      %2724 = vst [vmem:[%s307 + $0xf8] sm:$0xff] %v2660
      %2725 = vst [vmem:[%s307 + $0x100] sm:$0xff] %v2661
      %2726 = vst [vmem:[%s307 + $0x108] sm:$0xff] %v2662
      %2727 = vst [vmem:[%s307 + $0x110] sm:$0xff] %v2663
      %2728 = vst [vmem:[%s307 + $0x118] sm:$0xff] %v2664
      %2729 = vst [vmem:[%s307 + $0x120] sm:$0xff] %v2665
      %2730 = vst [vmem:[%s307 + $0x128] sm:$0xff] %v2666
      %2731 = vst [vmem:[%s307 + $0x130] sm:$0xff] %v2667
      %2732 = vst [vmem:[%s307 + $0x138] sm:$0xff] %v2668
      %2733 = vst [vmem:[%s307 + $0x140] sm:$0xff] %v2669
      %2734 = vst [vmem:[%s307 + $0x148] sm:$0xff] %v2670
      %2735 = vst [vmem:[%s307 + $0x150] sm:$0xff] %v2671
      %2736 = vst [vmem:[%s307 + $0x158] sm:$0xff] %v2672
      %2737 = vst [vmem:[%s307 + $0x160] sm:$0xff] %v2673
      %2738 = vst [vmem:[%s307 + $0x168] sm:$0xff] %v2674
      %2739 = vst [vmem:[%s307 + $0x170] sm:$0xff] %v2675
      %2740 = vst [vmem:[%s307 + $0x178] sm:$0xff] %v2676
      %2741 = vst [vmem:[%s307 + $0x180] sm:$0xff] %v2677
      %2742 = vst [vmem:[%s307 + $0x188] sm:$0xff] %v2678
      %2743 = vst [vmem:[%s307 + $0x190] sm:$0xff] %v2679
      %2744 = vst [vmem:[%s307 + $0x198] sm:$0xff] %v2680
      %2745 = vst [vmem:[%s307 + $0x1a0] sm:$0xff] %v2681
      %2746 = vst [vmem:[%s307 + $0x1a8] sm:$0xff] %v2682
      %2747 = vst [vmem:[%s307 + $0x1b0] sm:$0xff] %v2683
      %2748 = vst [vmem:[%s307 + $0x1b8] sm:$0xff] %v2684
      %2749 = vst [vmem:[%s307 + $0x1c0] sm:$0xff] %v2685
      %2750 = vst [vmem:[%s307 + $0x1c8] sm:$0xff] %v2686
      %2751 = vst [vmem:[%s307 + $0x1d0] sm:$0xff] %v2687
      %2752 = vst [vmem:[%s307 + $0x1d8] sm:$0xff] %v2688
      %2753 = vst [vmem:[%s307 + $0x1e0] sm:$0xff] %v2689
      %2754 = vst [vmem:[%s307 + $0x1e8] sm:$0xff] %v2690
      %2755 = vst [vmem:[%s307 + $0x1f0] sm:$0xff] %v2691
      %2756 = vst [vmem:[%s307 + $0x1f8] sm:$0xff] %v2692
      %s2757 = smul.u32 32, %s20
      %p2758 = scmp.lt.s32.totalorder %s19, 1
      %s2759 = scalar_select %p2758, %s19, 1
      %p2760 = scmp.lt.s32.totalorder %s2757, 31
      %s2761 = scalar_select %p2760, %s2757, 31
      %s2762 = smul.addr %s2759, 64
      %s2763 = sadd.s32 %s2761, %s2762
      %s2764 = smul.addr %s2763, 8
      %s2765 = scalar_lea.vmem %s4, %s2764
      // Predicated region
      $region37: #{lot_layer_forward.1} parent=35 // pred_check
        %p2766 = pneg %p152
      $region38: #{lot_layer_forward.1} parent=35 // pred_check_branch
        %2768 = sbr.rel (%p2766) target = $region40
      $region39: #{lot_layer_forward.1} parent=35 // pred_region
        %s2769 = smul.u32 32, %s20
      $region40: #{lot_layer_forward.1} parent=35 // pred_fallthru
        _
    $region36: #{lot_layer_forward.1} parent=5 // pred_fallthru
      _
    %p2770 = scmp.le.s32.totalorder 2, %s10
    // Predicated region
    $region41: #{lot_layer_forward.1} parent=5 // pred_check
      %p2771 = pneg %p2770
    $region42: #{lot_layer_forward.1} parent=5 // pred_check_branch
      %2773 = sbr.rel (%p2771) target = $region44
    $region43: #{lot_layer_forward.1} parent=5 // pred_region
      %s2774 = ssub.s32 %s10, 2
      // Predicated region
      $region45: #{lot_layer_forward.1} parent=43 // pred_check
        %p2775 = pneg %p158
      $region46: #{lot_layer_forward.1} parent=43 // pred_check_branch
        %2777 = sbr.rel (%p2775) target = $region48
      $region47: #{lot_layer_forward.1} parent=43 // pred_region
        %s2778 = smul.u32 32, %s22
        %p2779 = scmp.lt.s32.totalorder %s21, 1
        %s2780 = scalar_select %p2779, %s21, 1
        %p2781 = scmp.lt.s32.totalorder %s2778, 31
        %s2782 = scalar_select %p2781, %s2778, 31
        %s2783 = smul.addr %s2780, 64
        %s2784 = sadd.s32 %s2782, %s2783
        %s2785 = smul.addr %s2784, 8
        %s2786 = scalar_lea.vmem %s4, %s2785
      $region48: #{lot_layer_forward.1} parent=43 // pred_fallthru
        _
    $region44: #{lot_layer_forward.1} parent=5 // pred_fallthru
      _
  $region6: #{lot_layer_forward.1} parent=0 // loop_footer
    %s14 = sadd.s32 1, %s10
  $region7: #{lot_layer_forward.1} parent=0 // loop_footer_branch
    %9 = sbr.rel target = $region3
  $region8: #{lot_layer_forward.1} parent=0 // loop_exit
    _

</llo_original>
